<compile_context>
chip_gen: v6e
topology: v6e:2x2x1
jax: 0.10.0
libtpu: 0.0.40
codegen_flags: <defaults>
</compile_context>

<pallas_src>
import math
import functools

import jax
import jax.numpy as jnp
from jax.experimental import pallas as pl
from jax.experimental.pallas import tpu as pltpu


def lambda_init_fn(depth):
    return 0.8 - 0.6 * math.exp(-0.3 * depth)


# --------------------------------------------------------------------------
# Fused kernel: one batch element per grid step.
#   qkv = x @ Wqkv^T + b  ->  per-head differential attention (halves are
#   contiguous channel windows, sliced in-kernel)  ->  RMSNorm * (1-lam_init)
#   ->  merged [T, C] (lane-dense)  ->  @ Wo^T + bo  ->  single HBM write.
# --------------------------------------------------------------------------
def _fused_diff_attn_kernel(lam_ref, x_ref, wqkv_ref, bqkv_ref, wo_ref, bo_ref,
                            g_ref, o_ref, *, num_heads, dh, dh2, C, scale,
                            lambda_init, eps):
    lam = lam_ref[0]                                          # scalar in SMEM
    x = x_ref[0]                                              # (T, C)

    # Single fused q/k/v projection: (T, C) @ (C, 3C)  -> lane-dense 192-wide.
    qkv = jnp.dot(x, wqkv_ref[...], preferred_element_type=jnp.float32)
    qkv = qkv + bqkv_ref[...]
    q = qkv[:, :C]
    k = qkv[:, C:2 * C]
    v = qkv[:, 2 * C:3 * C]
    g = g_ref[...]                                            # (1, dh)

    def sdpa(qq, kk, vv):
        # scale already folded into qq
        s = jnp.dot(qq, kk.T, preferred_element_type=jnp.float32)
        m = jnp.max(s, axis=-1, keepdims=True)
        p = jnp.exp(s - m)
        inv = pl.reciprocal(jnp.sum(p, axis=-1, keepdims=True), approx=True)
        return jnp.dot(p * inv, vv, preferred_element_type=jnp.float32)

    # Heads/halves are contiguous channel ranges; static (unrolled) loop over
    # the 4 heads keeps everything in one basic block for the scheduler.
    heads = []
    for h in range(num_heads):
        base = h * dh
        q1 = q[:, base:base + dh2] * scale
        q2 = q[:, base + dh2:base + dh] * scale
        k1 = k[:, base:base + dh2]
        k2 = k[:, base + dh2:base + dh]
        vh = v[:, base:base + dh]

        attn = sdpa(q1, k1, vh) - lam * sdpa(q2, k2, vh)      # (T, dh)

        ms = jnp.mean(attn * attn, axis=-1, keepdims=True)    # RMSNorm
        normed = attn * jax.lax.rsqrt(ms + eps) * g
        heads.append(normed * (1.0 - lambda_init))

    merged = jnp.concatenate(heads, axis=-1)                  # (T, C) lane-dense

    out = jnp.dot(merged, wo_ref[...], preferred_element_type=jnp.float32)
    out = out + bo_ref[...]
    o_ref[0] = out.astype(o_ref.dtype)
    # TODO(synk): nn.Dropout / SDPA dropout omitted (dropout_rate = 0.0).


def diff_spatial_attention(x, params, *, num_heads, lambda_init, eps=1e-5):
    """x: [B, T, C]; params hold PyTorch-layout Linear weights (Cout, Cin)."""
    B, T, C = x.shape
    dh = C // num_heads
    dh2 = dh // 2
    scale = 1.0 / math.sqrt(dh2)   # SDPA default scale uses q's last dim (dh2)

    # One-time wrapper glue: concat q/k/v projections into a single matmul.
    wqkv_t = jnp.concatenate(
        [params["wq"].T, params["wk"].T, params["wv"].T], axis=1)   # (C, 3C)
    bqkv = jnp.concatenate(
        [params["bq"], params["bk"], params["bv"]]).reshape(1, 3 * C)
    wo_t = params["wo"].T
    bo = params["bo"].reshape(1, C)
    g = params["rms_w"].reshape(1, dh).astype(jnp.float32)

    lambda_full = (jnp.exp(jnp.sum(params["lq1"] * params["lk1"]))
                   - jnp.exp(jnp.sum(params["lq2"] * params["lk2"]))
                   + lambda_init)
    lam = jnp.asarray(lambda_full, jnp.float32).reshape(1)

    kern = functools.partial(_fused_diff_attn_kernel, num_heads=num_heads,
                             dh=dh, dh2=dh2, C=C, scale=scale,
                             lambda_init=lambda_init, eps=eps)

    return pl.pallas_call(
        kern,
        out_shape=jax.ShapeDtypeStruct((B, T, C), jnp.float32),
        grid=(B,),
        in_specs=[
            pl.BlockSpec(memory_space=pltpu.MemorySpace.SMEM),     # lambda_full
            pl.BlockSpec((1, T, C), lambda b: (b, 0, 0)),          # x
            pl.BlockSpec((C, 3 * C), lambda b: (0, 0)),            # W_qkv^T
            pl.BlockSpec((1, 3 * C), lambda b: (0, 0)),            # b_qkv
            pl.BlockSpec((C, C), lambda b: (0, 0)),                # W_o^T
            pl.BlockSpec((1, C), lambda b: (0, 0)),                # b_o
            pl.BlockSpec((1, dh), lambda b: (0, 0)),               # rmsnorm gamma
        ],
        out_specs=pl.BlockSpec((1, T, C), lambda b: (b, 0, 0)),
        compiler_params=pltpu.CompilerParams(
            dimension_semantics=("parallel",)),
    )(lam, x, wqkv_t, bqkv, wo_t, bo, g)


# --------------------------------------------------------------------------
# Pure-JAX reference for validation
# --------------------------------------------------------------------------
def reference(x, params, *, num_heads, lambda_init):
    HI = jax.lax.Precision.HIGHEST
    B, T, C = x.shape
    dh = C // num_heads
    dh2 = dh // 2

    def lin(z, w, b):
        return jnp.einsum("btc,oc->bto", z, w, precision=HI) + b

    q = lin(x, params["wq"], params["bq"])
    k = lin(x, params["wk"], params["bk"])
    v = lin(x, params["wv"], params["bv"])

    lambda_full = (jnp.exp(jnp.sum(params["lq1"] * params["lk1"]))
                   - jnp.exp(jnp.sum(params["lq2"] * params["lk2"]))
                   + lambda_init)

    q = q.reshape(B, T, num_heads, 2, dh2).transpose(0, 2, 1, 3, 4)
    k = k.reshape(B, T, num_heads, 2, dh2).transpose(0, 2, 1, 3, 4)
    v = v.reshape(B, T, num_heads, dh).transpose(0, 2, 1, 3)
    q1, q2 = q[:, :, :, 0], q[:, :, :, 1]
    k1, k2 = k[:, :, :, 0], k[:, :, :, 1]

    def sdpa(qq, kk):
        s = jnp.einsum("bhtd,bhnd->bhtn", qq, kk, precision=HI) / math.sqrt(dh2)
        p = jax.nn.softmax(s, axis=-1)
        return jnp.einsum("bhtn,bhnd->bhtd", p, v, precision=HI)

    attn = sdpa(q1, k1) - lambda_full * sdpa(q2, k2)
    ms = jnp.mean(attn * attn, axis=-1, keepdims=True)
    out = attn * jax.lax.rsqrt(ms + 1e-5) * params["rms_w"]
    out = out * (1.0 - lambda_init)
    out = out.transpose(0, 2, 1, 3).reshape(B, T, C)
    return lin(out, params["wo"], params["bo"])


if __name__ == "__main__":
    # args: encoder_size=64, diff_num_heads=4, bias=True, dropout=0.0, depth=1
    B, Hs, Ws = 2, 4, 4
    T = Hs * Ws                     # H*W spatial tokens
    C = 64                          # encoder_size
    num_heads = 4
    dh = C // num_heads
    dh2 = dh // 2
    depth = 1
    lam_init = lambda_init_fn(depth)

    key = jax.random.PRNGKey(0)
    ks = jax.random.split(key, 16)
    s = 1.0 / math.sqrt(C)
    params = {
        "wq": jax.random.normal(ks[0], (C, C), jnp.float32) * s,
        "bq": jax.random.normal(ks[1], (C,), jnp.float32) * 0.01,
        "wk": jax.random.normal(ks[2], (C, C), jnp.float32) * s,
        "bk": jax.random.normal(ks[3], (C,), jnp.float32) * 0.01,
        "wv": jax.random.normal(ks[4], (C, C), jnp.float32) * s,
        "bv": jax.random.normal(ks[5], (C,), jnp.float32) * 0.01,
        "wo": jax.random.normal(ks[6], (C, C), jnp.float32) * s,
        "bo": jax.random.normal(ks[7], (C,), jnp.float32) * 0.01,
        "lq1": jax.random.normal(ks[8], (dh2,), jnp.float32) * 0.1,
        "lq2": jax.random.normal(ks[9], (dh2,), jnp.float32) * 0.1,
        "lk1": jax.random.normal(ks[10], (dh2,), jnp.float32) * 0.1,
        "lk2": jax.random.normal(ks[11], (dh2,), jnp.float32) * 0.1,
        "rms_w": jnp.ones((dh,), jnp.float32),  # elementwise_affine init
    }

    x = jax.random.normal(ks[12], (B, T, C), jnp.float32)

    out = diff_spatial_attention(x, params, num_heads=num_heads,
                                 lambda_init=lam_init)
    out = jax.block_until_ready(out)

    ref = reference(x, params, num_heads=num_heads, lambda_init=lam_init)
    ref = jax.block_until_ready(ref)

    assert out.shape == (B, T, C), out.shape
    err = float(jnp.max(jnp.abs(out - ref)))
    assert err < 1e-2, f"max abs error {err}"
    print("KERNEL_OK")
</pallas_src>

<mosaic_0001>
module attributes {stable_mosaic.version = 11 : i64} {
  func.func @_fused_diff_attn_kernel(%arg0: i32, %arg1: memref<1xf32, #tpu.memory_space<smem>>, %arg2: memref<1x16x64xf32, #tpu.memory_space<vmem>>, %arg3: memref<64x192xf32, #tpu.memory_space<vmem>>, %arg4: memref<1x192xf32, #tpu.memory_space<vmem>>, %arg5: memref<64x64xf32, #tpu.memory_space<vmem>>, %arg6: memref<1x64xf32, #tpu.memory_space<vmem>>, %arg7: memref<1x16xf32, #tpu.memory_space<vmem>>, %arg8: memref<1x16x64xf32, #tpu.memory_space<vmem>>) attributes {dimension_semantics = [#tpu.dimension_semantics<parallel>], iteration_bounds = array<i64: 2>, scalar_prefetch = 0 : i64, scratch_operands = 0 : i64, tpu.core_type = #tpu.core_type<tc>, window_params = [{transform_indices = @transform_0, window_bounds = array<i64: 1>}, {transform_indices = @transform_1, window_bounds = array<i64: 1, 16, 64>}, {pipeline_mode = #tpu.pipeline_mode<synchronous>, transform_indices = @transform_2, window_bounds = array<i64: 64, 192>}, {pipeline_mode = #tpu.pipeline_mode<synchronous>, transform_indices = @transform_3, window_bounds = array<i64: 1, 192>}, {pipeline_mode = #tpu.pipeline_mode<synchronous>, transform_indices = @transform_4, window_bounds = array<i64: 64, 64>}, {pipeline_mode = #tpu.pipeline_mode<synchronous>, transform_indices = @transform_5, window_bounds = array<i64: 1, 64>}, {pipeline_mode = #tpu.pipeline_mode<synchronous>, transform_indices = @transform_6, window_bounds = array<i64: 1, 16>}, {transform_indices = @transform_7, window_bounds = array<i64: 1, 16, 64>}]} {
    %c0 = arith.constant 0 : index
    %0 = memref.load %arg1[%c0] : memref<1xf32, #tpu.memory_space<smem>>
    %c0_0 = arith.constant 0 : index
    %c0_1 = arith.constant 0 : index
    %c0_2 = arith.constant 0 : index
    %1 = vector.load %arg2[%c0_0, %c0_1, %c0_2] : memref<1x16x64xf32, #tpu.memory_space<vmem>>, vector<1x16x64xf32>
    %2 = vector.shape_cast %1 : vector<1x16x64xf32> to vector<16x64xf32>
    %c0_3 = arith.constant 0 : index
    %c0_4 = arith.constant 0 : index
    %3 = vector.load %arg3[%c0_3, %c0_4] : memref<64x192xf32, #tpu.memory_space<vmem>>, vector<64x192xf32>
    %cst = arith.constant dense<0.000000e+00> : vector<16x192xf32>
    %4 = tpu.matmul %2, %3, %cst {dimension_numbers = #tpu.dot_dimension_numbers<[1], [0], [0], [1], [0, 0, 1, 1], [], []>} : vector<16x64xf32>, vector<64x192xf32>, vector<16x192xf32> -> vector<16x192xf32>
    %c0_5 = arith.constant 0 : index
    %c0_6 = arith.constant 0 : index
    %5 = vector.load %arg4[%c0_5, %c0_6] : memref<1x192xf32, #tpu.memory_space<vmem>>, vector<1x192xf32>
    %6 = vector.broadcast %5 : vector<1x192xf32> to vector<16x192xf32>
    %7 = arith.addf %4, %6 : vector<16x192xf32>
    %8 = vector.extract_strided_slice %7 {offsets = [0, 0], sizes = [16, 64], strides = [1, 1]} : vector<16x192xf32> to vector<16x64xf32>
    %9 = vector.extract_strided_slice %7 {offsets = [0, 64], sizes = [16, 64], strides = [1, 1]} : vector<16x192xf32> to vector<16x64xf32>
    %10 = vector.extract_strided_slice %7 {offsets = [0, 128], sizes = [16, 64], strides = [1, 1]} : vector<16x192xf32> to vector<16x64xf32>
    %c0_7 = arith.constant 0 : index
    %c0_8 = arith.constant 0 : index
    %11 = vector.load %arg7[%c0_7, %c0_8] : memref<1x16xf32, #tpu.memory_space<vmem>>, vector<1x16xf32>
    %12 = vector.extract_strided_slice %8 {offsets = [0, 0], sizes = [16, 8], strides = [1, 1]} : vector<16x64xf32> to vector<16x8xf32>
    %cst_9 = arith.constant 0.353553385 : f32
    %13 = vector.broadcast %cst_9 : f32 to vector<16x8xf32>
    %14 = arith.mulf %12, %13 : vector<16x8xf32>
    %15 = vector.extract_strided_slice %8 {offsets = [0, 8], sizes = [16, 8], strides = [1, 1]} : vector<16x64xf32> to vector<16x8xf32>
    %cst_10 = arith.constant 0.353553385 : f32
    %16 = vector.broadcast %cst_10 : f32 to vector<16x8xf32>
    %17 = arith.mulf %15, %16 : vector<16x8xf32>
    %18 = vector.extract_strided_slice %9 {offsets = [0, 0], sizes = [16, 8], strides = [1, 1]} : vector<16x64xf32> to vector<16x8xf32>
    %19 = vector.extract_strided_slice %9 {offsets = [0, 8], sizes = [16, 8], strides = [1, 1]} : vector<16x64xf32> to vector<16x8xf32>
    %20 = vector.extract_strided_slice %10 {offsets = [0, 0], sizes = [16, 16], strides = [1, 1]} : vector<16x64xf32> to vector<16x16xf32>
    %21 = tpu.transpose %18, [1, 0] : vector<16x8xf32> -> vector<8x16xf32>
    %cst_11 = arith.constant dense<0.000000e+00> : vector<16x16xf32>
    %22 = tpu.matmul %14, %21, %cst_11 {dimension_numbers = #tpu.dot_dimension_numbers<[1], [0], [0], [1], [0, 0, 1, 1], [], []>} : vector<16x8xf32>, vector<8x16xf32>, vector<16x16xf32> -> vector<16x16xf32>
    %cst_12 = arith.constant dense<0xFF800000> : vector<16xf32>
    %23 = vector.multi_reduction <maximumf>, %22, %cst_12 [1] : vector<16x16xf32> to vector<16xf32>
    %24 = vector.shape_cast %23 : vector<16xf32> to vector<16x1xf32>
    %25 = vector.broadcast %24 : vector<16x1xf32> to vector<16x16xf32>
    %26 = arith.subf %22, %25 : vector<16x16xf32>
    %27 = math.exp %26 : vector<16x16xf32>
    %cst_13 = arith.constant dense<0.000000e+00> : vector<16xf32>
    %28 = vector.multi_reduction <add>, %27, %cst_13 [1] : vector<16x16xf32> to vector<16xf32>
    %29 = vector.shape_cast %28 : vector<16xf32> to vector<16x1xf32>
    %30 = tpu.reciprocal %29 {approx = true} : vector<16x1xf32> -> vector<16x1xf32>
    %31 = vector.broadcast %30 : vector<16x1xf32> to vector<16x16xf32>
    %32 = arith.mulf %27, %31 : vector<16x16xf32>
    %cst_14 = arith.constant dense<0.000000e+00> : vector<16x16xf32>
    %33 = tpu.matmul %32, %20, %cst_14 {dimension_numbers = #tpu.dot_dimension_numbers<[1], [0], [0], [1], [0, 0, 1, 1], [], []>} : vector<16x16xf32>, vector<16x16xf32>, vector<16x16xf32> -> vector<16x16xf32>
    %34 = tpu.transpose %19, [1, 0] : vector<16x8xf32> -> vector<8x16xf32>
    %cst_15 = arith.constant dense<0.000000e+00> : vector<16x16xf32>
    %35 = tpu.matmul %17, %34, %cst_15 {dimension_numbers = #tpu.dot_dimension_numbers<[1], [0], [0], [1], [0, 0, 1, 1], [], []>} : vector<16x8xf32>, vector<8x16xf32>, vector<16x16xf32> -> vector<16x16xf32>
    %cst_16 = arith.constant dense<0xFF800000> : vector<16xf32>
    %36 = vector.multi_reduction <maximumf>, %35, %cst_16 [1] : vector<16x16xf32> to vector<16xf32>
    %37 = vector.shape_cast %36 : vector<16xf32> to vector<16x1xf32>
    %38 = vector.broadcast %37 : vector<16x1xf32> to vector<16x16xf32>
    %39 = arith.subf %35, %38 : vector<16x16xf32>
    %40 = math.exp %39 : vector<16x16xf32>
    %cst_17 = arith.constant dense<0.000000e+00> : vector<16xf32>
    %41 = vector.multi_reduction <add>, %40, %cst_17 [1] : vector<16x16xf32> to vector<16xf32>
    %42 = vector.shape_cast %41 : vector<16xf32> to vector<16x1xf32>
    %43 = tpu.reciprocal %42 {approx = true} : vector<16x1xf32> -> vector<16x1xf32>
    %44 = vector.broadcast %43 : vector<16x1xf32> to vector<16x16xf32>
    %45 = arith.mulf %40, %44 : vector<16x16xf32>
    %cst_18 = arith.constant dense<0.000000e+00> : vector<16x16xf32>
    %46 = tpu.matmul %45, %20, %cst_18 {dimension_numbers = #tpu.dot_dimension_numbers<[1], [0], [0], [1], [0, 0, 1, 1], [], []>} : vector<16x16xf32>, vector<16x16xf32>, vector<16x16xf32> -> vector<16x16xf32>
    %47 = vector.broadcast %0 : f32 to vector<16x16xf32>
    %48 = arith.mulf %47, %46 : vector<16x16xf32>
    %49 = arith.subf %33, %48 : vector<16x16xf32>
    %50 = arith.mulf %49, %49 : vector<16x16xf32>
    %cst_19 = arith.constant dense<0.000000e+00> : vector<16xf32>
    %51 = vector.multi_reduction <add>, %50, %cst_19 [1] : vector<16x16xf32> to vector<16xf32>
    %52 = vector.shape_cast %51 : vector<16xf32> to vector<16x1xf32>
    %cst_20 = arith.constant 1.600000e+01 : f32
    %53 = vector.broadcast %cst_20 : f32 to vector<16x1xf32>
    %54 = arith.divf %52, %53 : vector<16x1xf32>
    %cst_21 = arith.constant 9.99999974E-6 : f32
    %55 = vector.broadcast %cst_21 : f32 to vector<16x1xf32>
    %56 = arith.addf %54, %55 : vector<16x1xf32>
    %57 = math.rsqrt %56 : vector<16x1xf32>
    %58 = vector.broadcast %57 : vector<16x1xf32> to vector<16x16xf32>
    %59 = arith.mulf %49, %58 : vector<16x16xf32>
    %60 = vector.broadcast %11 : vector<1x16xf32> to vector<16x16xf32>
    %61 = arith.mulf %59, %60 : vector<16x16xf32>
    %cst_22 = arith.constant 0.644490957 : f32
    %62 = vector.broadcast %cst_22 : f32 to vector<16x16xf32>
    %63 = arith.mulf %61, %62 : vector<16x16xf32>
    %64 = vector.extract_strided_slice %8 {offsets = [0, 16], sizes = [16, 8], strides = [1, 1]} : vector<16x64xf32> to vector<16x8xf32>
    %cst_23 = arith.constant 0.353553385 : f32
    %65 = vector.broadcast %cst_23 : f32 to vector<16x8xf32>
    %66 = arith.mulf %64, %65 : vector<16x8xf32>
    %67 = vector.extract_strided_slice %8 {offsets = [0, 24], sizes = [16, 8], strides = [1, 1]} : vector<16x64xf32> to vector<16x8xf32>
    %cst_24 = arith.constant 0.353553385 : f32
    %68 = vector.broadcast %cst_24 : f32 to vector<16x8xf32>
    %69 = arith.mulf %67, %68 : vector<16x8xf32>
    %70 = vector.extract_strided_slice %9 {offsets = [0, 16], sizes = [16, 8], strides = [1, 1]} : vector<16x64xf32> to vector<16x8xf32>
    %71 = vector.extract_strided_slice %9 {offsets = [0, 24], sizes = [16, 8], strides = [1, 1]} : vector<16x64xf32> to vector<16x8xf32>
    %72 = vector.extract_strided_slice %10 {offsets = [0, 16], sizes = [16, 16], strides = [1, 1]} : vector<16x64xf32> to vector<16x16xf32>
    %73 = tpu.transpose %70, [1, 0] : vector<16x8xf32> -> vector<8x16xf32>
    %cst_25 = arith.constant dense<0.000000e+00> : vector<16x16xf32>
    %74 = tpu.matmul %66, %73, %cst_25 {dimension_numbers = #tpu.dot_dimension_numbers<[1], [0], [0], [1], [0, 0, 1, 1], [], []>} : vector<16x8xf32>, vector<8x16xf32>, vector<16x16xf32> -> vector<16x16xf32>
    %cst_26 = arith.constant dense<0xFF800000> : vector<16xf32>
    %75 = vector.multi_reduction <maximumf>, %74, %cst_26 [1] : vector<16x16xf32> to vector<16xf32>
    %76 = vector.shape_cast %75 : vector<16xf32> to vector<16x1xf32>
    %77 = vector.broadcast %76 : vector<16x1xf32> to vector<16x16xf32>
    %78 = arith.subf %74, %77 : vector<16x16xf32>
    %79 = math.exp %78 : vector<16x16xf32>
    %cst_27 = arith.constant dense<0.000000e+00> : vector<16xf32>
    %80 = vector.multi_reduction <add>, %79, %cst_27 [1] : vector<16x16xf32> to vector<16xf32>
    %81 = vector.shape_cast %80 : vector<16xf32> to vector<16x1xf32>
    %82 = tpu.reciprocal %81 {approx = true} : vector<16x1xf32> -> vector<16x1xf32>
    %83 = vector.broadcast %82 : vector<16x1xf32> to vector<16x16xf32>
    %84 = arith.mulf %79, %83 : vector<16x16xf32>
    %cst_28 = arith.constant dense<0.000000e+00> : vector<16x16xf32>
    %85 = tpu.matmul %84, %72, %cst_28 {dimension_numbers = #tpu.dot_dimension_numbers<[1], [0], [0], [1], [0, 0, 1, 1], [], []>} : vector<16x16xf32>, vector<16x16xf32>, vector<16x16xf32> -> vector<16x16xf32>
    %86 = tpu.transpose %71, [1, 0] : vector<16x8xf32> -> vector<8x16xf32>
    %cst_29 = arith.constant dense<0.000000e+00> : vector<16x16xf32>
    %87 = tpu.matmul %69, %86, %cst_29 {dimension_numbers = #tpu.dot_dimension_numbers<[1], [0], [0], [1], [0, 0, 1, 1], [], []>} : vector<16x8xf32>, vector<8x16xf32>, vector<16x16xf32> -> vector<16x16xf32>
    %cst_30 = arith.constant dense<0xFF800000> : vector<16xf32>
    %88 = vector.multi_reduction <maximumf>, %87, %cst_30 [1] : vector<16x16xf32> to vector<16xf32>
    %89 = vector.shape_cast %88 : vector<16xf32> to vector<16x1xf32>
    %90 = vector.broadcast %89 : vector<16x1xf32> to vector<16x16xf32>
    %91 = arith.subf %87, %90 : vector<16x16xf32>
    %92 = math.exp %91 : vector<16x16xf32>
    %cst_31 = arith.constant dense<0.000000e+00> : vector<16xf32>
    %93 = vector.multi_reduction <add>, %92, %cst_31 [1] : vector<16x16xf32> to vector<16xf32>
    %94 = vector.shape_cast %93 : vector<16xf32> to vector<16x1xf32>
    %95 = tpu.reciprocal %94 {approx = true} : vector<16x1xf32> -> vector<16x1xf32>
    %96 = vector.broadcast %95 : vector<16x1xf32> to vector<16x16xf32>
    %97 = arith.mulf %92, %96 : vector<16x16xf32>
    %cst_32 = arith.constant dense<0.000000e+00> : vector<16x16xf32>
    %98 = tpu.matmul %97, %72, %cst_32 {dimension_numbers = #tpu.dot_dimension_numbers<[1], [0], [0], [1], [0, 0, 1, 1], [], []>} : vector<16x16xf32>, vector<16x16xf32>, vector<16x16xf32> -> vector<16x16xf32>
    %99 = vector.broadcast %0 : f32 to vector<16x16xf32>
    %100 = arith.mulf %99, %98 : vector<16x16xf32>
    %101 = arith.subf %85, %100 : vector<16x16xf32>
    %102 = arith.mulf %101, %101 : vector<16x16xf32>
    %cst_33 = arith.constant dense<0.000000e+00> : vector<16xf32>
    %103 = vector.multi_reduction <add>, %102, %cst_33 [1] : vector<16x16xf32> to vector<16xf32>
    %104 = vector.shape_cast %103 : vector<16xf32> to vector<16x1xf32>
    %cst_34 = arith.constant 1.600000e+01 : f32
    %105 = vector.broadcast %cst_34 : f32 to vector<16x1xf32>
    %106 = arith.divf %104, %105 : vector<16x1xf32>
    %cst_35 = arith.constant 9.99999974E-6 : f32
    %107 = vector.broadcast %cst_35 : f32 to vector<16x1xf32>
    %108 = arith.addf %106, %107 : vector<16x1xf32>
    %109 = math.rsqrt %108 : vector<16x1xf32>
    %110 = vector.broadcast %109 : vector<16x1xf32> to vector<16x16xf32>
    %111 = arith.mulf %101, %110 : vector<16x16xf32>
    %112 = vector.broadcast %11 : vector<1x16xf32> to vector<16x16xf32>
    %113 = arith.mulf %111, %112 : vector<16x16xf32>
    %cst_36 = arith.constant 0.644490957 : f32
    %114 = vector.broadcast %cst_36 : f32 to vector<16x16xf32>
    %115 = arith.mulf %113, %114 : vector<16x16xf32>
    %116 = vector.extract_strided_slice %8 {offsets = [0, 32], sizes = [16, 8], strides = [1, 1]} : vector<16x64xf32> to vector<16x8xf32>
    %cst_37 = arith.constant 0.353553385 : f32
    %117 = vector.broadcast %cst_37 : f32 to vector<16x8xf32>
    %118 = arith.mulf %116, %117 : vector<16x8xf32>
    %119 = vector.extract_strided_slice %8 {offsets = [0, 40], sizes = [16, 8], strides = [1, 1]} : vector<16x64xf32> to vector<16x8xf32>
    %cst_38 = arith.constant 0.353553385 : f32
    %120 = vector.broadcast %cst_38 : f32 to vector<16x8xf32>
    %121 = arith.mulf %119, %120 : vector<16x8xf32>
    %122 = vector.extract_strided_slice %9 {offsets = [0, 32], sizes = [16, 8], strides = [1, 1]} : vector<16x64xf32> to vector<16x8xf32>
    %123 = vector.extract_strided_slice %9 {offsets = [0, 40], sizes = [16, 8], strides = [1, 1]} : vector<16x64xf32> to vector<16x8xf32>
    %124 = vector.extract_strided_slice %10 {offsets = [0, 32], sizes = [16, 16], strides = [1, 1]} : vector<16x64xf32> to vector<16x16xf32>
    %125 = tpu.transpose %122, [1, 0] : vector<16x8xf32> -> vector<8x16xf32>
    %cst_39 = arith.constant dense<0.000000e+00> : vector<16x16xf32>
    %126 = tpu.matmul %118, %125, %cst_39 {dimension_numbers = #tpu.dot_dimension_numbers<[1], [0], [0], [1], [0, 0, 1, 1], [], []>} : vector<16x8xf32>, vector<8x16xf32>, vector<16x16xf32> -> vector<16x16xf32>
    %cst_40 = arith.constant dense<0xFF800000> : vector<16xf32>
    %127 = vector.multi_reduction <maximumf>, %126, %cst_40 [1] : vector<16x16xf32> to vector<16xf32>
    %128 = vector.shape_cast %127 : vector<16xf32> to vector<16x1xf32>
    %129 = vector.broadcast %128 : vector<16x1xf32> to vector<16x16xf32>
    %130 = arith.subf %126, %129 : vector<16x16xf32>
    %131 = math.exp %130 : vector<16x16xf32>
    %cst_41 = arith.constant dense<0.000000e+00> : vector<16xf32>
    %132 = vector.multi_reduction <add>, %131, %cst_41 [1] : vector<16x16xf32> to vector<16xf32>
    %133 = vector.shape_cast %132 : vector<16xf32> to vector<16x1xf32>
    %134 = tpu.reciprocal %133 {approx = true} : vector<16x1xf32> -> vector<16x1xf32>
    %135 = vector.broadcast %134 : vector<16x1xf32> to vector<16x16xf32>
    %136 = arith.mulf %131, %135 : vector<16x16xf32>
    %cst_42 = arith.constant dense<0.000000e+00> : vector<16x16xf32>
    %137 = tpu.matmul %136, %124, %cst_42 {dimension_numbers = #tpu.dot_dimension_numbers<[1], [0], [0], [1], [0, 0, 1, 1], [], []>} : vector<16x16xf32>, vector<16x16xf32>, vector<16x16xf32> -> vector<16x16xf32>
    %138 = tpu.transpose %123, [1, 0] : vector<16x8xf32> -> vector<8x16xf32>
    %cst_43 = arith.constant dense<0.000000e+00> : vector<16x16xf32>
    %139 = tpu.matmul %121, %138, %cst_43 {dimension_numbers = #tpu.dot_dimension_numbers<[1], [0], [0], [1], [0, 0, 1, 1], [], []>} : vector<16x8xf32>, vector<8x16xf32>, vector<16x16xf32> -> vector<16x16xf32>
    %cst_44 = arith.constant dense<0xFF800000> : vector<16xf32>
    %140 = vector.multi_reduction <maximumf>, %139, %cst_44 [1] : vector<16x16xf32> to vector<16xf32>
    %141 = vector.shape_cast %140 : vector<16xf32> to vector<16x1xf32>
    %142 = vector.broadcast %141 : vector<16x1xf32> to vector<16x16xf32>
    %143 = arith.subf %139, %142 : vector<16x16xf32>
    %144 = math.exp %143 : vector<16x16xf32>
    %cst_45 = arith.constant dense<0.000000e+00> : vector<16xf32>
    %145 = vector.multi_reduction <add>, %144, %cst_45 [1] : vector<16x16xf32> to vector<16xf32>
    %146 = vector.shape_cast %145 : vector<16xf32> to vector<16x1xf32>
    %147 = tpu.reciprocal %146 {approx = true} : vector<16x1xf32> -> vector<16x1xf32>
    %148 = vector.broadcast %147 : vector<16x1xf32> to vector<16x16xf32>
    %149 = arith.mulf %144, %148 : vector<16x16xf32>
    %cst_46 = arith.constant dense<0.000000e+00> : vector<16x16xf32>
    %150 = tpu.matmul %149, %124, %cst_46 {dimension_numbers = #tpu.dot_dimension_numbers<[1], [0], [0], [1], [0, 0, 1, 1], [], []>} : vector<16x16xf32>, vector<16x16xf32>, vector<16x16xf32> -> vector<16x16xf32>
    %151 = vector.broadcast %0 : f32 to vector<16x16xf32>
    %152 = arith.mulf %151, %150 : vector<16x16xf32>
    %153 = arith.subf %137, %152 : vector<16x16xf32>
    %154 = arith.mulf %153, %153 : vector<16x16xf32>
    %cst_47 = arith.constant dense<0.000000e+00> : vector<16xf32>
    %155 = vector.multi_reduction <add>, %154, %cst_47 [1] : vector<16x16xf32> to vector<16xf32>
    %156 = vector.shape_cast %155 : vector<16xf32> to vector<16x1xf32>
    %cst_48 = arith.constant 1.600000e+01 : f32
    %157 = vector.broadcast %cst_48 : f32 to vector<16x1xf32>
    %158 = arith.divf %156, %157 : vector<16x1xf32>
    %cst_49 = arith.constant 9.99999974E-6 : f32
    %159 = vector.broadcast %cst_49 : f32 to vector<16x1xf32>
    %160 = arith.addf %158, %159 : vector<16x1xf32>
    %161 = math.rsqrt %160 : vector<16x1xf32>
    %162 = vector.broadcast %161 : vector<16x1xf32> to vector<16x16xf32>
    %163 = arith.mulf %153, %162 : vector<16x16xf32>
    %164 = vector.broadcast %11 : vector<1x16xf32> to vector<16x16xf32>
    %165 = arith.mulf %163, %164 : vector<16x16xf32>
    %cst_50 = arith.constant 0.644490957 : f32
    %166 = vector.broadcast %cst_50 : f32 to vector<16x16xf32>
    %167 = arith.mulf %165, %166 : vector<16x16xf32>
    %168 = vector.extract_strided_slice %8 {offsets = [0, 48], sizes = [16, 8], strides = [1, 1]} : vector<16x64xf32> to vector<16x8xf32>
    %cst_51 = arith.constant 0.353553385 : f32
    %169 = vector.broadcast %cst_51 : f32 to vector<16x8xf32>
    %170 = arith.mulf %168, %169 : vector<16x8xf32>
    %171 = vector.extract_strided_slice %8 {offsets = [0, 56], sizes = [16, 8], strides = [1, 1]} : vector<16x64xf32> to vector<16x8xf32>
    %cst_52 = arith.constant 0.353553385 : f32
    %172 = vector.broadcast %cst_52 : f32 to vector<16x8xf32>
    %173 = arith.mulf %171, %172 : vector<16x8xf32>
    %174 = vector.extract_strided_slice %9 {offsets = [0, 48], sizes = [16, 8], strides = [1, 1]} : vector<16x64xf32> to vector<16x8xf32>
    %175 = vector.extract_strided_slice %9 {offsets = [0, 56], sizes = [16, 8], strides = [1, 1]} : vector<16x64xf32> to vector<16x8xf32>
    %176 = vector.extract_strided_slice %10 {offsets = [0, 48], sizes = [16, 16], strides = [1, 1]} : vector<16x64xf32> to vector<16x16xf32>
    %177 = tpu.transpose %174, [1, 0] : vector<16x8xf32> -> vector<8x16xf32>
    %cst_53 = arith.constant dense<0.000000e+00> : vector<16x16xf32>
    %178 = tpu.matmul %170, %177, %cst_53 {dimension_numbers = #tpu.dot_dimension_numbers<[1], [0], [0], [1], [0, 0, 1, 1], [], []>} : vector<16x8xf32>, vector<8x16xf32>, vector<16x16xf32> -> vector<16x16xf32>
    %cst_54 = arith.constant dense<0xFF800000> : vector<16xf32>
    %179 = vector.multi_reduction <maximumf>, %178, %cst_54 [1] : vector<16x16xf32> to vector<16xf32>
    %180 = vector.shape_cast %179 : vector<16xf32> to vector<16x1xf32>
    %181 = vector.broadcast %180 : vector<16x1xf32> to vector<16x16xf32>
    %182 = arith.subf %178, %181 : vector<16x16xf32>
    %183 = math.exp %182 : vector<16x16xf32>
    %cst_55 = arith.constant dense<0.000000e+00> : vector<16xf32>
    %184 = vector.multi_reduction <add>, %183, %cst_55 [1] : vector<16x16xf32> to vector<16xf32>
    %185 = vector.shape_cast %184 : vector<16xf32> to vector<16x1xf32>
    %186 = tpu.reciprocal %185 {approx = true} : vector<16x1xf32> -> vector<16x1xf32>
    %187 = vector.broadcast %186 : vector<16x1xf32> to vector<16x16xf32>
    %188 = arith.mulf %183, %187 : vector<16x16xf32>
    %cst_56 = arith.constant dense<0.000000e+00> : vector<16x16xf32>
    %189 = tpu.matmul %188, %176, %cst_56 {dimension_numbers = #tpu.dot_dimension_numbers<[1], [0], [0], [1], [0, 0, 1, 1], [], []>} : vector<16x16xf32>, vector<16x16xf32>, vector<16x16xf32> -> vector<16x16xf32>
    %190 = tpu.transpose %175, [1, 0] : vector<16x8xf32> -> vector<8x16xf32>
    %cst_57 = arith.constant dense<0.000000e+00> : vector<16x16xf32>
    %191 = tpu.matmul %173, %190, %cst_57 {dimension_numbers = #tpu.dot_dimension_numbers<[1], [0], [0], [1], [0, 0, 1, 1], [], []>} : vector<16x8xf32>, vector<8x16xf32>, vector<16x16xf32> -> vector<16x16xf32>
    %cst_58 = arith.constant dense<0xFF800000> : vector<16xf32>
    %192 = vector.multi_reduction <maximumf>, %191, %cst_58 [1] : vector<16x16xf32> to vector<16xf32>
    %193 = vector.shape_cast %192 : vector<16xf32> to vector<16x1xf32>
    %194 = vector.broadcast %193 : vector<16x1xf32> to vector<16x16xf32>
    %195 = arith.subf %191, %194 : vector<16x16xf32>
    %196 = math.exp %195 : vector<16x16xf32>
    %cst_59 = arith.constant dense<0.000000e+00> : vector<16xf32>
    %197 = vector.multi_reduction <add>, %196, %cst_59 [1] : vector<16x16xf32> to vector<16xf32>
    %198 = vector.shape_cast %197 : vector<16xf32> to vector<16x1xf32>
    %199 = tpu.reciprocal %198 {approx = true} : vector<16x1xf32> -> vector<16x1xf32>
    %200 = vector.broadcast %199 : vector<16x1xf32> to vector<16x16xf32>
    %201 = arith.mulf %196, %200 : vector<16x16xf32>
    %cst_60 = arith.constant dense<0.000000e+00> : vector<16x16xf32>
    %202 = tpu.matmul %201, %176, %cst_60 {dimension_numbers = #tpu.dot_dimension_numbers<[1], [0], [0], [1], [0, 0, 1, 1], [], []>} : vector<16x16xf32>, vector<16x16xf32>, vector<16x16xf32> -> vector<16x16xf32>
    %203 = vector.broadcast %0 : f32 to vector<16x16xf32>
    %204 = arith.mulf %203, %202 : vector<16x16xf32>
    %205 = arith.subf %189, %204 : vector<16x16xf32>
    %206 = arith.mulf %205, %205 : vector<16x16xf32>
    %cst_61 = arith.constant dense<0.000000e+00> : vector<16xf32>
    %207 = vector.multi_reduction <add>, %206, %cst_61 [1] : vector<16x16xf32> to vector<16xf32>
    %208 = vector.shape_cast %207 : vector<16xf32> to vector<16x1xf32>
    %cst_62 = arith.constant 1.600000e+01 : f32
    %209 = vector.broadcast %cst_62 : f32 to vector<16x1xf32>
    %210 = arith.divf %208, %209 : vector<16x1xf32>
    %cst_63 = arith.constant 9.99999974E-6 : f32
    %211 = vector.broadcast %cst_63 : f32 to vector<16x1xf32>
    %212 = arith.addf %210, %211 : vector<16x1xf32>
    %213 = math.rsqrt %212 : vector<16x1xf32>
    %214 = vector.broadcast %213 : vector<16x1xf32> to vector<16x16xf32>
    %215 = arith.mulf %205, %214 : vector<16x16xf32>
    %216 = vector.broadcast %11 : vector<1x16xf32> to vector<16x16xf32>
    %217 = arith.mulf %215, %216 : vector<16x16xf32>
    %cst_64 = arith.constant 0.644490957 : f32
    %218 = vector.broadcast %cst_64 : f32 to vector<16x16xf32>
    %219 = arith.mulf %217, %218 : vector<16x16xf32>
    %220 = tpu.concatenate %63, %115, %167, %219 in 1 : vector<16x16xf32>, vector<16x16xf32>, vector<16x16xf32>, vector<16x16xf32> -> vector<16x64xf32>
    %c0_65 = arith.constant 0 : index
    %c0_66 = arith.constant 0 : index
    %221 = vector.load %arg5[%c0_65, %c0_66] : memref<64x64xf32, #tpu.memory_space<vmem>>, vector<64x64xf32>
    %cst_67 = arith.constant dense<0.000000e+00> : vector<16x64xf32>
    %222 = tpu.matmul %220, %221, %cst_67 {dimension_numbers = #tpu.dot_dimension_numbers<[1], [0], [0], [1], [0, 0, 1, 1], [], []>} : vector<16x64xf32>, vector<64x64xf32>, vector<16x64xf32> -> vector<16x64xf32>
    %c0_68 = arith.constant 0 : index
    %c0_69 = arith.constant 0 : index
    %223 = vector.load %arg6[%c0_68, %c0_69] : memref<1x64xf32, #tpu.memory_space<vmem>>, vector<1x64xf32>
    %224 = vector.broadcast %223 : vector<1x64xf32> to vector<16x64xf32>
    %225 = arith.addf %222, %224 : vector<16x64xf32>
    %c0_70 = arith.constant 0 : index
    %c0_71 = arith.constant 0 : index
    %c0_72 = arith.constant 0 : index
    %226 = vector.load %arg8[%c0_70, %c0_71, %c0_72] : memref<1x16x64xf32, #tpu.memory_space<vmem>>, vector<1x16x64xf32>
    %227 = vector.shape_cast %226 : vector<1x16x64xf32> to vector<16x64xf32>
    %228 = vector.shape_cast %225 : vector<16x64xf32> to vector<1x16x64xf32>
    tpu.vector_store %arg8[%c0_70, %c0_71, %c0_72], %228 {strides = array<i32>} : memref<1x16x64xf32, #tpu.memory_space<vmem>>, vector<1x16x64xf32>,
    return
  }
  func.func @transform_0(%arg0: i32) -> i32 {
    %c0_i32 = arith.constant 0 : i32
    %c0_i32_0 = arith.constant 0 : i32
    return %c0_i32 : i32
  }
  func.func @transform_1(%arg0: i32) -> (i32, i32, i32) {
    %c0_i32 = arith.constant 0 : i32
    %c0_i32_0 = arith.constant 0 : i32
    %c0_i32_1 = arith.constant 0 : i32
    return %arg0, %c0_i32, %c0_i32_0 : i32, i32, i32
  }
  func.func @transform_2(%arg0: i32) -> (i32, i32) {
    %c0_i32 = arith.constant 0 : i32
    %c0_i32_0 = arith.constant 0 : i32
    %c0_i32_1 = arith.constant 0 : i32
    return %c0_i32, %c0_i32_0 : i32, i32
  }
  func.func @transform_3(%arg0: i32) -> (i32, i32) {
    %c0_i32 = arith.constant 0 : i32
    %c0_i32_0 = arith.constant 0 : i32
    %c0_i32_1 = arith.constant 0 : i32
    return %c0_i32, %c0_i32_0 : i32, i32
  }
  func.func @transform_4(%arg0: i32) -> (i32, i32) {
    %c0_i32 = arith.constant 0 : i32
    %c0_i32_0 = arith.constant 0 : i32
    %c0_i32_1 = arith.constant 0 : i32
    return %c0_i32, %c0_i32_0 : i32, i32
  }
  func.func @transform_5(%arg0: i32) -> (i32, i32) {
    %c0_i32 = arith.constant 0 : i32
    %c0_i32_0 = arith.constant 0 : i32
    %c0_i32_1 = arith.constant 0 : i32
    return %c0_i32, %c0_i32_0 : i32, i32
  }
  func.func @transform_6(%arg0: i32) -> (i32, i32) {
    %c0_i32 = arith.constant 0 : i32
    %c0_i32_0 = arith.constant 0 : i32
    %c0_i32_1 = arith.constant 0 : i32
    return %c0_i32, %c0_i32_0 : i32, i32
  }
  func.func @transform_7(%arg0: i32) -> (i32, i32, i32) {
    %c0_i32 = arith.constant 0 : i32
    %c0_i32_0 = arith.constant 0 : i32
    %c0_i32_1 = arith.constant 0 : i32
    return %arg0, %c0_i32, %c0_i32_0 : i32, i32, i32
  }
}

</mosaic_0001>

<llo_original>
// kernel: tpu_custom_call.1
$region0: #{tpu_custom_call.1}
  #allocation0 [shape = 'u32[]', space=smem, size = 0x4, offset = 0x4, fixed_abs, tag = 'smem constant byte address 0x4 - core index']
  #allocation1 [shape = 'u32[144,128]{1,0:T(1,128)}', space=vmem, size = 0x12000, scoped, tag = 'internal scratch']
  #allocation2 [shape = 'f32[1]{0:T(128)S(6)}', space=smem, size = 0x200, scoped, tag = 'scoped memory for tpu_custom_call.1']
  %s0 = inlined_call_operand.<no memory space> [shape: f32[1], index: 0, kind: input, shape index: {}]
  %s1 = inlined_call_operand.hbm [shape: f32[2,16,64], index: 1, kind: input, shape index: {}]
  %s2 = inlined_call_operand.hbm [shape: f32[64,192], index: 2, kind: input, shape index: {}]
  %s3 = inlined_call_operand.vmem [shape: f32[1,192], index: 3, kind: input, shape index: {}]
  %s4 = inlined_call_operand.hbm [shape: f32[64,64], index: 4, kind: input, shape index: {}]
  %s5 = inlined_call_operand.vmem [shape: f32[1,64], index: 5, kind: input, shape index: {}]
  %s6 = inlined_call_operand.vmem [shape: f32[1,16], index: 6, kind: input, shape index: {}]
  %s7 = inlined_call_operand.hbm [shape: f32[2,16,64], index: 7, kind: output, shape index: {}]
  %s8 = sld [smem:[#allocation0]]
  $region73: #{tpu_custom_call.1} parent=0
    _
  %s10 = ssub.s32 1, %s8
  %s11 = scalar_select 0, %s10, %s8
  %12 = sst [smem:[#allocation2]] %s0
  $region1: #{tpu_custom_call.1} parent=0
    #allocation3 [shape = 'u8[16384]{0}', space=vmem, size = 0x4000, scoped, tag = 'input window, operand 1']
    #allocation4 [shape = 's32[2]{0}', space=sflag, size = 0x8, scoped, tag = 'scoped memory for tpu_custom_call.1']
    #allocation5 [shape = 's32[2]{0}', space=sflag, size = 0x8, scoped, tag = 'scoped memory for tpu_custom_call.1']
    #allocation6 [shape = 'u8[65536]{0}', space=vmem, size = 0x10000, scoped, tag = 'input window, operand 2, single buffered']
    #allocation7 [shape = 's32[1]{0}', space=sflag, size = 0x4, scoped, tag = 'scoped memory for tpu_custom_call.1']
    #allocation8 [shape = 'u8[32768]{0}', space=vmem, size = 0x8000, scoped, tag = 'input window, operand 4, single buffered']
    #allocation9 [shape = 'u8[16384]{0}', space=vmem, size = 0x4000, scoped, tag = 'output window, operand 0']
    %13 = vsyncpa [#allocation4], 0
    %s14 = scalar_lea.sflag [#allocation4], 1
    %15 = vsyncpa %s14, 0
    %16 = vsyncpa [#allocation7], 0
    %17 = vsyncpa [#allocation5], 0
    %s18 = scalar_lea.sflag [#allocation5], 1
    %19 = vsyncpa %s18, 0
    loop: start=0, step=1, limit=4
    $region2: #{tpu_custom_call.1} parent=1 // loop_pre_header
      _
    $region3: #{tpu_custom_call.1} parent=1 // loop_header
      %s21 = sphi 0, %s25
      %p22 = scmp.ge.s32.totalorder %s21, 4
      %s29 = sphi 0, %s29
      %s31 = sphi 0, %s29
      %s32 = sphi 0, %s31
      %s46 = sphi 0, %s32
      %s52 = sphi 0, %s54
      %s55 = sphi 0, %s52
      %s56 = sphi 0, %s55
      %s72 = sphi 0, %s56
      %s76 = sphi 0, %s76
      %s78 = sphi 0, %s76
      %s79 = sphi 0, %s78
      %s93 = sphi 0, %s79
      %s97 = sphi 0, %s97
      %s99 = sphi 0, %s97
      %s100 = sphi 0, %s99
      %s114 = sphi 0, %s100
      %s118 = sphi 0, %s118
      %s120 = sphi 0, %s118
      %s121 = sphi 0, %s120
      %s135 = sphi 0, %s121
      %s139 = sphi 0, %s139
      %s141 = sphi 0, %s139
      %s142 = sphi 0, %s141
      %s156 = sphi 0, %s142
      %s160 = sphi 0, %s160
      %s162 = sphi 0, %s160
      %s163 = sphi 0, %s162
      %s177 = sphi 0, %s163
      %s183 = sphi 0, %s185
      %s186 = sphi 0, %s183
      %s187 = sphi 0, %s186
      %s203 = sphi 0, %s187
    $region4: #{tpu_custom_call.1} parent=1 // loop_header_branch
      %24 = sbr.rel (%p22) target = $region8
    $region5: #{tpu_custom_call.1} parent=1 // loop_body
      %s26 = ssub.s32 %s21, 1
      %s27 = ssub.s32 %s21, 2
      %s28 = sadd.s32 %s21, 1
      %s30 = sadd.s32 %s29, 1
      %p33 = scmp.eq.s32.totalorder %s21, 1
      %p34 = scmp.ne.s32.totalorder %s29, %s31
      %p35 = scmp.eq.s32.totalorder %s21, 0
      %p36 = por %p34, %p35
      %p37 = scmp.ne.s32.totalorder %s29, %s31
      %p38 = scmp.eq.s32.totalorder %s26, 1
      %p39 = por %p37, %p38
      %p40 = scmp.ne.s32.totalorder %s31, %s32
      %p41 = scmp.eq.s32.totalorder %s26, 0
      %p42 = por %p40, %p41
      %p43 = scmp.ne.s32.totalorder %s31, %s32
      %p44 = scmp.eq.s32.totalorder %s27, 1
      %p45 = por %p43, %p44
      %p47 = scmp.ne.s32.totalorder %s32, %s46
      %p48 = scmp.eq.s32.totalorder %s27, 0
      %p49 = por %p47, %p48
      %s50 = ssub.s32 %s21, %s28
      %p51 = scmp.eq.s32.totalorder %s50, 0
      %s53 = sadd.s32 %s52, 1
      %s54 = scalar_select %p51, %s52, %s53
      %p57 = pneg %p51
      %p58 = scmp.eq.s32.totalorder %s21, 1
      %p59 = por %p57, %p58
      %p60 = scmp.ne.s32.totalorder %s52, %s55
      %p61 = scmp.eq.s32.totalorder %s21, 0
      %p62 = por %p60, %p61
      %p63 = scmp.ne.s32.totalorder %s52, %s55
      %p64 = scmp.eq.s32.totalorder %s26, 1
      %p65 = por %p63, %p64
      %p66 = scmp.ne.s32.totalorder %s55, %s56
      %p67 = scmp.eq.s32.totalorder %s26, 0
      %p68 = por %p66, %p67
      %p69 = scmp.ne.s32.totalorder %s55, %s56
      %p70 = scmp.eq.s32.totalorder %s27, 1
      %p71 = por %p69, %p70
      %p73 = scmp.ne.s32.totalorder %s56, %s72
      %p74 = scmp.eq.s32.totalorder %s27, 0
      %p75 = por %p73, %p74
      %s77 = sadd.s32 %s76, 1
      %p80 = scmp.eq.s32.totalorder %s21, 1
      %p81 = scmp.ne.s32.totalorder %s76, %s78
      %p82 = scmp.eq.s32.totalorder %s21, 0
      %p83 = por %p81, %p82
      %p84 = scmp.ne.s32.totalorder %s76, %s78
      %p85 = scmp.eq.s32.totalorder %s26, 1
      %p86 = por %p84, %p85
      %p87 = scmp.ne.s32.totalorder %s78, %s79
      %p88 = scmp.eq.s32.totalorder %s26, 0
      %p89 = por %p87, %p88
      %p90 = scmp.ne.s32.totalorder %s78, %s79
      %p91 = scmp.eq.s32.totalorder %s27, 1
      %p92 = por %p90, %p91
      %p94 = scmp.ne.s32.totalorder %s79, %s93
      %p95 = scmp.eq.s32.totalorder %s27, 0
      %p96 = por %p94, %p95
      %s98 = sadd.s32 %s97, 1
      %p101 = scmp.eq.s32.totalorder %s21, 1
      %p102 = scmp.ne.s32.totalorder %s97, %s99
      %p103 = scmp.eq.s32.totalorder %s21, 0
      %p104 = por %p102, %p103
      %p105 = scmp.ne.s32.totalorder %s97, %s99
      %p106 = scmp.eq.s32.totalorder %s26, 1
      %p107 = por %p105, %p106
      %p108 = scmp.ne.s32.totalorder %s99, %s100
      %p109 = scmp.eq.s32.totalorder %s26, 0
      %p110 = por %p108, %p109
      %p111 = scmp.ne.s32.totalorder %s99, %s100
      %p112 = scmp.eq.s32.totalorder %s27, 1
      %p113 = por %p111, %p112
      %p115 = scmp.ne.s32.totalorder %s100, %s114
      %p116 = scmp.eq.s32.totalorder %s27, 0
      %p117 = por %p115, %p116
      %s119 = sadd.s32 %s118, 1
      %p122 = scmp.eq.s32.totalorder %s21, 1
      %p123 = scmp.ne.s32.totalorder %s118, %s120
      %p124 = scmp.eq.s32.totalorder %s21, 0
      %p125 = por %p123, %p124
      %p126 = scmp.ne.s32.totalorder %s118, %s120
      %p127 = scmp.eq.s32.totalorder %s26, 1
      %p128 = por %p126, %p127
      %p129 = scmp.ne.s32.totalorder %s120, %s121
      %p130 = scmp.eq.s32.totalorder %s26, 0
      %p131 = por %p129, %p130
      %p132 = scmp.ne.s32.totalorder %s120, %s121
      %p133 = scmp.eq.s32.totalorder %s27, 1
      %p134 = por %p132, %p133
      %p136 = scmp.ne.s32.totalorder %s121, %s135
      %p137 = scmp.eq.s32.totalorder %s27, 0
      %p138 = por %p136, %p137
      %s140 = sadd.s32 %s139, 1
      %p143 = scmp.eq.s32.totalorder %s21, 1
      %p144 = scmp.ne.s32.totalorder %s139, %s141
      %p145 = scmp.eq.s32.totalorder %s21, 0
      %p146 = por %p144, %p145
      %p147 = scmp.ne.s32.totalorder %s139, %s141
      %p148 = scmp.eq.s32.totalorder %s26, 1
      %p149 = por %p147, %p148
      %p150 = scmp.ne.s32.totalorder %s141, %s142
      %p151 = scmp.eq.s32.totalorder %s26, 0
      %p152 = por %p150, %p151
      %p153 = scmp.ne.s32.totalorder %s141, %s142
      %p154 = scmp.eq.s32.totalorder %s27, 1
      %p155 = por %p153, %p154
      %p157 = scmp.ne.s32.totalorder %s142, %s156
      %p158 = scmp.eq.s32.totalorder %s27, 0
      %p159 = por %p157, %p158
      %s161 = sadd.s32 %s160, 1
      %p164 = scmp.eq.s32.totalorder %s21, 1
      %p165 = scmp.ne.s32.totalorder %s160, %s162
      %p166 = scmp.eq.s32.totalorder %s21, 0
      %p167 = por %p165, %p166
      %p168 = scmp.ne.s32.totalorder %s160, %s162
      %p169 = scmp.eq.s32.totalorder %s26, 1
      %p170 = por %p168, %p169
      %p171 = scmp.ne.s32.totalorder %s162, %s163
      %p172 = scmp.eq.s32.totalorder %s26, 0
      %p173 = por %p171, %p172
      %p174 = scmp.ne.s32.totalorder %s162, %s163
      %p175 = scmp.eq.s32.totalorder %s27, 1
      %p176 = por %p174, %p175
      %p178 = scmp.ne.s32.totalorder %s163, %s177
      %p179 = scmp.eq.s32.totalorder %s27, 0
      %p180 = por %p178, %p179
      %s181 = ssub.s32 %s21, %s28
      %p182 = scmp.eq.s32.totalorder %s181, 0
      %s184 = sadd.s32 %s183, 1
      %s185 = scalar_select %p182, %s183, %s184
      %p188 = pneg %p182
      %p189 = scmp.eq.s32.totalorder %s21, 1
      %p190 = por %p188, %p189
      %p191 = scmp.ne.s32.totalorder %s183, %s186
      %p192 = scmp.eq.s32.totalorder %s21, 0
      %p193 = por %p191, %p192
      %p194 = scmp.ne.s32.totalorder %s183, %s186
      %p195 = scmp.eq.s32.totalorder %s26, 1
      %p196 = por %p194, %p195
      %p197 = scmp.ne.s32.totalorder %s186, %s187
      %p198 = scmp.eq.s32.totalorder %s26, 0
      %p199 = por %p197, %p198
      %p200 = scmp.ne.s32.totalorder %s186, %s187
      %p201 = scmp.eq.s32.totalorder %s27, 1
      %p202 = por %p200, %p201
      %p204 = scmp.ne.s32.totalorder %s187, %s203
      %p205 = scmp.eq.s32.totalorder %s27, 0
      %p206 = por %p204, %p205
      %p207 = scmp.le.s32.totalorder 1, %s21
      %p208 = scmp.lt.s32.totalorder %s21, 3
      %p209 = pnand %p207, %p208
      %p210 = pneg %p209
      // Predicated region
      $region9: #{tpu_custom_call.1} parent=5 // pred_check
        _
      $region10: #{tpu_custom_call.1} parent=5 // pred_check_branch
        %212 = sbr.rel (%p209) target = $region12
      $region11: #{tpu_custom_call.1} parent=5 // pred_region
        %s213 = ssub.s32 %s21, 1
        // Predicated region
        $region13: #{tpu_custom_call.1} parent=11 // pred_check
          %p214 = pneg %p42
        $region14: #{tpu_custom_call.1} parent=11 // pred_check_branch
          %216 = sbr.rel (%p214) target = $region16
        $region15: #{tpu_custom_call.1} parent=11 // pred_region
          _
        $region16: #{tpu_custom_call.1} parent=11 // pred_fallthru
          _
        // Predicated region
        $region17: #{tpu_custom_call.1} parent=11 // pred_check
          %p217 = pneg %p89
        $region18: #{tpu_custom_call.1} parent=11 // pred_check_branch
          %219 = sbr.rel (%p217) target = $region20
        $region19: #{tpu_custom_call.1} parent=11 // pred_region
          %s221 = ssub.s32 2048, 2048
          %222 = vsyncadd [#allocation7], %s221
          %s223 = sshll.u32 [#allocation6], 4
          %s224 = int_to_ptr.vmem [resolvable:$true] %s223
          %229 = dma.hbm_to_vmem [thread:$0]  %s2, 2048, %s224, [#allocation7], 256, 256, 16
        $region20: #{tpu_custom_call.1} parent=11 // pred_fallthru
          _
        // Predicated region
        $region21: #{tpu_custom_call.1} parent=11 // pred_check
          %p230 = pneg %p110
        $region22: #{tpu_custom_call.1} parent=11 // pred_check_branch
          %232 = sbr.rel (%p230) target = $region24
        $region23: #{tpu_custom_call.1} parent=11 // pred_region
          _
        $region24: #{tpu_custom_call.1} parent=11 // pred_fallthru
          _
        // Predicated region
        $region25: #{tpu_custom_call.1} parent=11 // pred_check
          %p233 = pneg %p131
        $region26: #{tpu_custom_call.1} parent=11 // pred_check_branch
          %235 = sbr.rel (%p233) target = $region28
        $region27: #{tpu_custom_call.1} parent=11 // pred_region
          %s237 = ssub.s32 1024, 1024
          %238 = vsyncadd [#allocation7], %s237
          %s239 = sshll.u32 [#allocation8], 4
          %s240 = int_to_ptr.vmem [resolvable:$true] %s239
          %245 = dma.hbm_to_vmem [thread:$0]  %s4, 1024, %s240, [#allocation7], 128, 128, 8
        $region28: #{tpu_custom_call.1} parent=11 // pred_fallthru
          _
        // Predicated region
        $region29: #{tpu_custom_call.1} parent=11 // pred_check
          %p246 = pneg %p152
        $region30: #{tpu_custom_call.1} parent=11 // pred_check_branch
          %248 = sbr.rel (%p246) target = $region32
        $region31: #{tpu_custom_call.1} parent=11 // pred_region
          _
        $region32: #{tpu_custom_call.1} parent=11 // pred_fallthru
          _
        // Predicated region
        $region33: #{tpu_custom_call.1} parent=11 // pred_check
          %p249 = pneg %p173
        $region34: #{tpu_custom_call.1} parent=11 // pred_check_branch
          %251 = sbr.rel (%p249) target = $region36
        $region35: #{tpu_custom_call.1} parent=11 // pred_region
          _
        $region36: #{tpu_custom_call.1} parent=11 // pred_fallthru
          _
      $region12: #{tpu_custom_call.1} parent=5 // pred_fallthru
        _
      %p252 = scmp.lt.s32.totalorder %s21, 2
      // Predicated region
      $region37: #{tpu_custom_call.1} parent=5 // pred_check
        %p253 = pneg %p252
      $region38: #{tpu_custom_call.1} parent=5 // pred_check_branch
        %255 = sbr.rel (%p253) target = $region40
      $region39: #{tpu_custom_call.1} parent=5 // pred_region
        // Predicated region
        $region41: #{tpu_custom_call.1} parent=39 // pred_check
          %p256 = pneg %p62
        $region42: #{tpu_custom_call.1} parent=39 // pred_check_branch
          %258 = sbr.rel (%p256) target = $region44
        $region43: #{tpu_custom_call.1} parent=39 // pred_region
          %s259 = sand.u32 %s52, 1
          %s260 = scalar_lea.sflag [#allocation4], %s259
          %s261 = sand.u32 %s52, 1
          %s262 = smul.addr %s261, 16
          %s263 = scalar_lea.vmem [#allocation3], %s262
          %s265 = ssub.s32 256, 256
          %266 = vsyncadd %s260, %s265
          %s267 = smul.addr %s21, 2
          %s268 = smul.addr %s267, 128
          %s269 = scalar_lea.hbm %s1, %s268
          %s270 = sshll.u32 %s263, 4
          %s271 = int_to_ptr.vmem [resolvable:$true] %s270
          %276 = dma.hbm_to_vmem [thread:$0]  %s269, 256, %s271, %s260, 128, 128, 8
        $region44: #{tpu_custom_call.1} parent=39 // pred_fallthru
          _
      $region40: #{tpu_custom_call.1} parent=5 // pred_fallthru
        _
      %p277 = scmp.le.s32.totalorder 1, %s21
      %p278 = scmp.lt.s32.totalorder %s21, 3
      %p279 = pnand %p277, %p278
      %p280 = pneg %p279
      // Predicated region
      $region45: #{tpu_custom_call.1} parent=5 // pred_check
        _
      $region46: #{tpu_custom_call.1} parent=5 // pred_check_branch
        %282 = sbr.rel (%p279) target = $region48
      $region47: #{tpu_custom_call.1} parent=5 // pred_region
        %s283 = ssub.s32 %s21, 1
        %s284 = sand.u32 %s55, 1
        %s285 = scalar_lea.sflag [#allocation4], %s284
        %s286 = sand.u32 %s55, 1
        %s287 = smul.addr %s286, 16
        %s288 = scalar_lea.vmem [#allocation3], %s287
        // Predicated region
        $region49: #{tpu_custom_call.1} parent=47 // pred_check
          %p289 = pneg %p68
        $region50: #{tpu_custom_call.1} parent=47 // pred_check_branch
          %291 = sbr.rel (%p289) target = $region52
        $region51: #{tpu_custom_call.1} parent=47 // pred_region
          %292 = dma.done %s285, 256
        $region52: #{tpu_custom_call.1} parent=47 // pred_fallthru
          _
        // Predicated region
        $region53: #{tpu_custom_call.1} parent=47 // pred_check
          %p293 = pneg %p89
        $region54: #{tpu_custom_call.1} parent=47 // pred_check_branch
          %295 = sbr.rel (%p293) target = $region56
        $region55: #{tpu_custom_call.1} parent=47 // pred_region
          %296 = dma.done [#allocation7], 2048
        $region56: #{tpu_custom_call.1} parent=47 // pred_fallthru
          _
        // Predicated region
        $region57: #{tpu_custom_call.1} parent=47 // pred_check
          %p297 = pneg %p131
        $region58: #{tpu_custom_call.1} parent=47 // pred_check_branch
          %299 = sbr.rel (%p297) target = $region60
        $region59: #{tpu_custom_call.1} parent=47 // pred_region
          %300 = dma.done [#allocation7], 1024
        $region60: #{tpu_custom_call.1} parent=47 // pred_fallthru
          _
        %p301 = pneg %p42
        %p302 = pneg %p39
        %s303 = sand.u32 %s55, 1
        %s304 = scalar_lea.sflag [#allocation4], %s303
        %s305 = sand.u32 %s55, 1
        %s306 = smul.addr %s305, 16
        %s307 = scalar_lea.vmem [#allocation3], %s306
        %p308 = pneg %p68
        %p309 = pneg %p65
        %p310 = pneg %p89
        %p311 = pneg %p86
        %p312 = pneg %p110
        %p313 = pneg %p107
        %p314 = pneg %p131
        %p315 = pneg %p128
        %p316 = pneg %p152
        %p317 = pneg %p149
        %p318 = pneg %p173
        %p319 = pneg %p170
        %p320 = pneg %p199
        %p321 = pneg %p196
        %s322 = sand.u32 %s186, 1
        %s323 = scalar_lea.sflag [#allocation5], %s322
        %s324 = sand.u32 %s186, 1
        %s325 = smul.addr %s324, 16
        %s326 = scalar_lea.vmem [#allocation9], %s325
        %s327 = sld [smem:[#allocation2]]
        %v328 = vld [vmem:[%s288] sm:$0xff]
        %v329 = vld [vmem:[%s288 + $0x8] sm:$0xff]
        %v330 = vld [vmem:[#allocation6] sm:$0xff]
        %v331 = vld [vmem:[#allocation6 + $0x8] sm:$0xff]
        %v332 = vld [vmem:[#allocation6 + $0x10] sm:$0xff]
        %v333 = vld [vmem:[#allocation6 + $0x18] sm:$0xff]
        %v334 = vld [vmem:[#allocation6 + $0x20] sm:$0xff]
        %v335 = vld [vmem:[#allocation6 + $0x28] sm:$0xff]
        %v336 = vld [vmem:[#allocation6 + $0x30] sm:$0xff]
        %v337 = vld [vmem:[#allocation6 + $0x38] sm:$0xff]
        %v338 = vld [vmem:[#allocation6 + $0x40] sm:$0xff]
        %v339 = vld [vmem:[#allocation6 + $0x48] sm:$0xff]
        %v340 = vld [vmem:[#allocation6 + $0x50] sm:$0xff]
        %v341 = vld [vmem:[#allocation6 + $0x58] sm:$0xff]
        %v342 = vld [vmem:[#allocation6 + $0x60] sm:$0xff]
        %v343 = vld [vmem:[#allocation6 + $0x68] sm:$0xff]
        %v344 = vld [vmem:[#allocation6 + $0x70] sm:$0xff]
        %v345 = vld [vmem:[#allocation6 + $0x78] sm:$0xff]
        %v346 = vld [vmem:[%s3] sm:$0x3]
        %v348 = vlaneseq
        %v349 = vshrl.u32 %v348, 7
        %v350 = vsub.s32 0, %v349
        %v351 = vrot.slane %v346, %v350
        %v352 = vlaneseq
        %v353 = vshrl.u32 %v352, 7
        %v354 = vsub.s32 1, %v353
        %v355 = vrot.slane %v346, %v354
        %vm358 = vcmask 523264
        %v360 = vsel %vm358, %v328, 0
        %v363 = vsel %vm358, %v329, 0
        %365 = vmatprep.subr.mxu0 0.0
        %366 = vmatpush1.msra.mxu0 0.0
        %367 = vmatprep.subr.mxu0 0.0
        %368 = vmatpush1.msra.mxu0 0.0
        %369 = vmatprep.subr.mxu0 0.0
        %370 = vmatpush1.msra.mxu0 0.0
        %371 = vmatprep.subr.mxu0 0.0
        %372 = vmatpush1.msra.mxu0 0.0
        %373 = vmatprep.subr.mxu0 0.0
        %374 = vmatpush1.msra.mxu0 0.0
        %375 = vmatprep.subr.mxu0 0.0
        %376 = vmatpush1.msra.mxu0 0.0
        %377 = vmatprep.subr.mxu0 0.0
        %378 = vmatpush1.msra.mxu0 0.0
        %379 = vmatprep.subr.mxu0 0.0
        %380 = vmatpush1.msra.mxu0 0.0
        %381 = vmatprep.subr.mxu0 %v345
        %382 = vmatpush1.msra.mxu0 %v344
        %383 = vmatprep.subr.mxu0 %v343
        %384 = vmatpush1.msra.mxu0 %v342
        %385 = vmatprep.subr.mxu0 %v341
        %386 = vmatpush1.msra.mxu0 %v340
        %387 = vmatprep.subr.mxu0 %v339
        %388 = vmatpush1.msra.mxu0 %v338
        %389 = vmatprep.subr.mxu0 %v337
        %390 = vmatpush1.msra.mxu0 %v336
        %391 = vmatprep.subr.mxu0 %v335
        %392 = vmatpush1.msra.mxu0 %v334
        %393 = vmatprep.subr.mxu0 %v333
        %394 = vmatpush1.msra.mxu0 %v332
        %395 = vmatprep.subr.mxu0 %v331
        %396 = vmatpush1.msra.mxu0 %v330
        %397 = vmatprep.subr.mxu0 0.0
        %398 = vmatpush2.msra.mxu0 0.0
        %399 = vmatprep.subr.mxu0 0.0
        %400 = vmatpush2.msra.mxu0 0.0
        %401 = vmatprep.subr.mxu0 0.0
        %402 = vmatpush2.msra.mxu0 0.0
        %403 = vmatprep.subr.mxu0 0.0
        %404 = vmatpush2.msra.mxu0 0.0
        %405 = vmatprep.subr.mxu0 0.0
        %406 = vmatpush2.msra.mxu0 0.0
        %407 = vmatprep.subr.mxu0 0.0
        %408 = vmatpush2.msra.mxu0 0.0
        %409 = vmatprep.subr.mxu0 0.0
        %410 = vmatpush2.msra.mxu0 0.0
        %411 = vmatprep.subr.mxu0 0.0
        %412 = vmatpush2.msra.mxu0 0.0
        %413 = vmatprep.subr.mxu0 0.0
        %414 = vmatpush2.msra.mxu0 0.0
        %415 = vmatprep.subr.mxu0 0.0
        %416 = vmatpush2.msra.mxu0 0.0
        %417 = vmatprep.subr.mxu0 0.0
        %418 = vmatpush2.msra.mxu0 0.0
        %419 = vmatprep.subr.mxu0 0.0
        %420 = vmatpush2.msra.mxu0 0.0
        %421 = vmatprep.subr.mxu0 0.0
        %422 = vmatpush2.msra.mxu0 0.0
        %423 = vmatprep.subr.mxu0 0.0
        %424 = vmatpush2.msra.mxu0 0.0
        %425 = vmatprep.subr.mxu0 0.0
        %426 = vmatpush2.msra.mxu0 0.0
        %427 = vmatprep.subr.mxu0 0.0
        %428 = vmatpush2.msra.mxu0 0.0
        %429 = vmatprep.mubr.f32.mxu0 0.0
        %430 = vmatmul.mubr.f32.gmra.mxu0 %v360
        %v431 = vpop.f32.mrf.mxu0
        %v432 = vadd.f32 %v351, %v431
        %v433 = vpop.f32.mrf.mxu0
        %v434 = vadd.f32 %v355, %v433
        %435 = vmatprep.mubr.f32.mxu0 0.0
        %436 = vmatmul.mubr.f32.gmra.mxu0 %v363
        %v437 = vpop.f32.mrf.mxu0
        %v438 = vadd.f32 %v351, %v437
        %v439 = vpop.f32.mrf.mxu0
        %v440 = vadd.f32 %v355, %v439
        %441 = vdwg.mxu0
        %v442 = vld [vmem:[%s6] sm:$0x1]
        %v443 = vmul.f32 %v432, 0.35355338
        %v444 = vmul.f32 %v438, 0.35355338
        %447 = vrot.lane.b32.xlu0 %v432, 64
        %v448 = vpop.permute.xlu0 %447
        %449 = vrot.lane.b32.xlu0 %v438, 64
        %v450 = vpop.permute.xlu0 %449
        %vm451 = vcmask 64512
        %v453 = vsel %vm451, %v443, 0
        %v456 = vsel %vm451, %v444, 0
        %v458 = vsel %vm451, %v448, 0
        %v460 = vsel %vm451, %v450, 0
        %462 = vmatprep.subr.mxu0 0.0
        %463 = vmatpush1.xpose.msra.mxu0 0.0
        %464 = vmatprep.subr.mxu0 0.0
        %465 = vmatpush1.xpose.msra.mxu0 0.0
        %466 = vmatprep.subr.mxu0 0.0
        %467 = vmatpush1.xpose.msra.mxu0 0.0
        %468 = vmatprep.subr.mxu0 0.0
        %469 = vmatpush1.xpose.msra.mxu0 0.0
        %470 = vmatprep.subr.mxu0 0.0
        %471 = vmatpush1.xpose.msra.mxu0 0.0
        %472 = vmatprep.subr.mxu0 0.0
        %473 = vmatpush1.xpose.msra.mxu0 0.0
        %474 = vmatprep.subr.mxu0 0.0
        %475 = vmatpush1.xpose.msra.mxu0 0.0
        %476 = vmatprep.subr.mxu0 0.0
        %477 = vmatpush1.xpose.msra.mxu0 0.0
        %478 = vmatprep.subr.mxu0 0.0
        %479 = vmatpush1.xpose.msra.mxu0 0.0
        %480 = vmatprep.subr.mxu0 0.0
        %481 = vmatpush1.xpose.msra.mxu0 0.0
        %482 = vmatprep.subr.mxu0 0.0
        %483 = vmatpush1.xpose.msra.mxu0 0.0
        %484 = vmatprep.subr.mxu0 0.0
        %485 = vmatpush1.xpose.msra.mxu0 0.0
        %486 = vmatprep.subr.mxu0 0.0
        %487 = vmatpush1.xpose.msra.mxu0 0.0
        %488 = vmatprep.subr.mxu0 0.0
        %489 = vmatpush1.xpose.msra.mxu0 0.0
        %490 = vmatprep.subr.mxu0 0.0
        %491 = vmatpush1.xpose.msra.mxu0 %v460
        %492 = vmatprep.subr.mxu0 0.0
        %493 = vmatpush1.xpose.msra.mxu0 %v458
        %494 = vmatprep.subr.mxu0 0.0
        %495 = vmatpush2.xpose.msra.mxu0 0.0
        %496 = vmatprep.subr.mxu0 0.0
        %497 = vmatpush2.xpose.msra.mxu0 0.0
        %498 = vmatprep.subr.mxu0 0.0
        %499 = vmatpush2.xpose.msra.mxu0 0.0
        %500 = vmatprep.subr.mxu0 0.0
        %501 = vmatpush2.xpose.msra.mxu0 0.0
        %502 = vmatprep.subr.mxu0 0.0
        %503 = vmatpush2.xpose.msra.mxu0 0.0
        %504 = vmatprep.subr.mxu0 0.0
        %505 = vmatpush2.xpose.msra.mxu0 0.0
        %506 = vmatprep.subr.mxu0 0.0
        %507 = vmatpush2.xpose.msra.mxu0 0.0
        %508 = vmatprep.subr.mxu0 0.0
        %509 = vmatpush2.xpose.msra.mxu0 0.0
        %510 = vmatprep.subr.mxu0 0.0
        %511 = vmatpush2.xpose.msra.mxu0 0.0
        %512 = vmatprep.subr.mxu0 0.0
        %513 = vmatpush2.xpose.msra.mxu0 0.0
        %514 = vmatprep.subr.mxu0 0.0
        %515 = vmatpush2.xpose.msra.mxu0 0.0
        %516 = vmatprep.subr.mxu0 0.0
        %517 = vmatpush2.xpose.msra.mxu0 0.0
        %518 = vmatprep.subr.mxu0 0.0
        %519 = vmatpush2.xpose.msra.mxu0 0.0
        %520 = vmatprep.subr.mxu0 0.0
        %521 = vmatpush2.xpose.msra.mxu0 0.0
        %522 = vmatprep.subr.mxu0 0.0
        %523 = vmatpush2.xpose.msra.mxu0 0.0
        %524 = vmatprep.subr.mxu0 0.0
        %525 = vmatpush2.xpose.msra.mxu0 0.0
        %526 = vmatprep.mubr.f32.mxu0 0.0
        %527 = vmatmul.mubr.f32.gmra.mxu0 %v453
        %v528 = vpop.f32.mrf.mxu0
        %v529 = vadd.f32 0.0, %v528
        %v530 = vpop.f32.mrf.mxu0
        %531 = vmatprep.mubr.f32.mxu0 0.0
        %532 = vmatmul.mubr.f32.gmra.mxu0 %v456
        %v533 = vpop.f32.mrf.mxu0
        %v534 = vadd.f32 0.0, %v533
        %v535 = vpop.f32.mrf.mxu0
        %536 = vdwg.mxu0
        %vm537 = vcmask 130048
        %v538 = vsel %vm537, %v529, -inf
        %539 = vmax.xlane.f32.xlu0 %v538
        %v540 = vpop.xlane.xlu0 %539
        %v541 = vsel %vm537, %v534, -inf
        %542 = vmax.xlane.f32.xlu0 %v541
        %v543 = vpop.xlane.xlu0 %542
        %v544 = vsub.f32 %v529, %v540
        %v545 = vsub.f32 %v534, %v543
        %v546 = vmul.f32 %v544, 1.442695
        %v547 = vpow.pop %v546
        %v548 = vmul.f32 %v545, 1.442695
        %v549 = vpow.pop %v548
        %v550 = vsel %vm537, %v547, 0.0
        %551 = vadd.xlane.f32.xlu0 %v550
        %v552 = vpop.xlane.xlu0 %551
        %v553 = vsel %vm537, %v549, 0.0
        %554 = vadd.xlane.f32.xlu0 %v553
        %v555 = vpop.xlane.xlu0 %554
        %v556 = vrcp.pop %v552
        %v557 = vrcp.pop %v555
        %v558 = vmul.f32 %v547, %v556
        %v559 = vmul.f32 %v549, %v557
        %v561 = vsel %vm537, %v558, 0
        %v564 = vsel %vm537, %v559, 0
        %566 = vmatprep.subr.mxu0 0.0
        %567 = vmatpush1.msra.mxu0 0.0
        %568 = vmatprep.subr.mxu0 0.0
        %569 = vmatpush1.msra.mxu0 0.0
        %570 = vmatprep.subr.mxu0 0.0
        %571 = vmatpush1.msra.mxu0 0.0
        %572 = vmatprep.subr.mxu0 0.0
        %573 = vmatpush1.msra.mxu0 0.0
        %574 = vmatprep.subr.mxu0 0.0
        %575 = vmatpush1.msra.mxu0 0.0
        %576 = vmatprep.subr.mxu0 0.0
        %577 = vmatpush1.msra.mxu0 0.0
        %578 = vmatprep.subr.mxu0 0.0
        %579 = vmatpush1.msra.mxu0 0.0
        %580 = vmatprep.subr.mxu0 0.0
        %581 = vmatpush1.msra.mxu0 0.0
        %582 = vmatprep.subr.mxu0 0.0
        %583 = vmatpush1.msra.mxu0 0.0
        %584 = vmatprep.subr.mxu0 0.0
        %585 = vmatpush1.msra.mxu0 0.0
        %586 = vmatprep.subr.mxu0 0.0
        %587 = vmatpush1.msra.mxu0 0.0
        %588 = vmatprep.subr.mxu0 0.0
        %589 = vmatpush1.msra.mxu0 0.0
        %590 = vmatprep.subr.mxu0 0.0
        %591 = vmatpush1.msra.mxu0 0.0
        %592 = vmatprep.subr.mxu0 0.0
        %593 = vmatpush1.msra.mxu0 0.0
        %594 = vmatprep.subr.mxu0 0.0
        %595 = vmatpush1.msra.mxu0 %v440
        %596 = vmatprep.subr.mxu0 0.0
        %597 = vmatpush1.msra.mxu0 %v434
        %598 = vmatprep.subr.mxu0 0.0
        %599 = vmatpush2.msra.mxu0 0.0
        %600 = vmatprep.subr.mxu0 0.0
        %601 = vmatpush2.msra.mxu0 0.0
        %602 = vmatprep.subr.mxu0 0.0
        %603 = vmatpush2.msra.mxu0 0.0
        %604 = vmatprep.subr.mxu0 0.0
        %605 = vmatpush2.msra.mxu0 0.0
        %606 = vmatprep.subr.mxu0 0.0
        %607 = vmatpush2.msra.mxu0 0.0
        %608 = vmatprep.subr.mxu0 0.0
        %609 = vmatpush2.msra.mxu0 0.0
        %610 = vmatprep.subr.mxu0 0.0
        %611 = vmatpush2.msra.mxu0 0.0
        %612 = vmatprep.subr.mxu0 0.0
        %613 = vmatpush2.msra.mxu0 0.0
        %614 = vmatprep.subr.mxu0 0.0
        %615 = vmatpush2.msra.mxu0 0.0
        %616 = vmatprep.subr.mxu0 0.0
        %617 = vmatpush2.msra.mxu0 0.0
        %618 = vmatprep.subr.mxu0 0.0
        %619 = vmatpush2.msra.mxu0 0.0
        %620 = vmatprep.subr.mxu0 0.0
        %621 = vmatpush2.msra.mxu0 0.0
        %622 = vmatprep.subr.mxu0 0.0
        %623 = vmatpush2.msra.mxu0 0.0
        %624 = vmatprep.subr.mxu0 0.0
        %625 = vmatpush2.msra.mxu0 0.0
        %626 = vmatprep.subr.mxu0 0.0
        %627 = vmatpush2.msra.mxu0 0.0
        %628 = vmatprep.subr.mxu0 0.0
        %629 = vmatpush2.msra.mxu0 0.0
        %630 = vmatprep.mubr.f32.mxu0 0.0
        %631 = vmatmul.mubr.f32.gmra.mxu0 %v561
        %v632 = vpop.f32.mrf.mxu0
        %v633 = vadd.f32 0.0, %v632
        %v634 = vpop.f32.mrf.mxu0
        %635 = vmatprep.mubr.f32.mxu0 0.0
        %636 = vmatmul.mubr.f32.gmra.mxu0 %v564
        %v637 = vpop.f32.mrf.mxu0
        %v638 = vadd.f32 0.0, %v637
        %v639 = vpop.f32.mrf.mxu0
        %640 = vdwg.mxu0
        %641 = vrot.lane.b32.xlu0 %v443, 120
        %v642 = vpop.permute.xlu0 %641
        %643 = vrot.lane.b32.xlu0 %v444, 120
        %v644 = vpop.permute.xlu0 %643
        %645 = vrot.lane.b32.xlu0 %v432, 56
        %v646 = vpop.permute.xlu0 %645
        %647 = vrot.lane.b32.xlu0 %v438, 56
        %v648 = vpop.permute.xlu0 %647
        %v649 = vsel %vm451, %v642, 0
        %v651 = vsel %vm451, %v644, 0
        %v653 = vsel %vm451, %v646, 0
        %v655 = vsel %vm451, %v648, 0
        %657 = vmatprep.subr.mxu0 0.0
        %658 = vmatpush1.xpose.msra.mxu0 0.0
        %659 = vmatprep.subr.mxu0 0.0
        %660 = vmatpush1.xpose.msra.mxu0 0.0
        %661 = vmatprep.subr.mxu0 0.0
        %662 = vmatpush1.xpose.msra.mxu0 0.0
        %663 = vmatprep.subr.mxu0 0.0
        %664 = vmatpush1.xpose.msra.mxu0 0.0
        %665 = vmatprep.subr.mxu0 0.0
        %666 = vmatpush1.xpose.msra.mxu0 0.0
        %667 = vmatprep.subr.mxu0 0.0
        %668 = vmatpush1.xpose.msra.mxu0 0.0
        %669 = vmatprep.subr.mxu0 0.0
        %670 = vmatpush1.xpose.msra.mxu0 0.0
        %671 = vmatprep.subr.mxu0 0.0
        %672 = vmatpush1.xpose.msra.mxu0 0.0
        %673 = vmatprep.subr.mxu0 0.0
        %674 = vmatpush1.xpose.msra.mxu0 0.0
        %675 = vmatprep.subr.mxu0 0.0
        %676 = vmatpush1.xpose.msra.mxu0 0.0
        %677 = vmatprep.subr.mxu0 0.0
        %678 = vmatpush1.xpose.msra.mxu0 0.0
        %679 = vmatprep.subr.mxu0 0.0
        %680 = vmatpush1.xpose.msra.mxu0 0.0
        %681 = vmatprep.subr.mxu0 0.0
        %682 = vmatpush1.xpose.msra.mxu0 0.0
        %683 = vmatprep.subr.mxu0 0.0
        %684 = vmatpush1.xpose.msra.mxu0 0.0
        %685 = vmatprep.subr.mxu0 0.0
        %686 = vmatpush1.xpose.msra.mxu0 %v655
        %687 = vmatprep.subr.mxu0 0.0
        %688 = vmatpush1.xpose.msra.mxu0 %v653
        %689 = vmatprep.subr.mxu0 0.0
        %690 = vmatpush2.xpose.msra.mxu0 0.0
        %691 = vmatprep.subr.mxu0 0.0
        %692 = vmatpush2.xpose.msra.mxu0 0.0
        %693 = vmatprep.subr.mxu0 0.0
        %694 = vmatpush2.xpose.msra.mxu0 0.0
        %695 = vmatprep.subr.mxu0 0.0
        %696 = vmatpush2.xpose.msra.mxu0 0.0
        %697 = vmatprep.subr.mxu0 0.0
        %698 = vmatpush2.xpose.msra.mxu0 0.0
        %699 = vmatprep.subr.mxu0 0.0
        %700 = vmatpush2.xpose.msra.mxu0 0.0
        %701 = vmatprep.subr.mxu0 0.0
        %702 = vmatpush2.xpose.msra.mxu0 0.0
        %703 = vmatprep.subr.mxu0 0.0
        %704 = vmatpush2.xpose.msra.mxu0 0.0
        %705 = vmatprep.subr.mxu0 0.0
        %706 = vmatpush2.xpose.msra.mxu0 0.0
        %707 = vmatprep.subr.mxu0 0.0
        %708 = vmatpush2.xpose.msra.mxu0 0.0
        %709 = vmatprep.subr.mxu0 0.0
        %710 = vmatpush2.xpose.msra.mxu0 0.0
        %711 = vmatprep.subr.mxu0 0.0
        %712 = vmatpush2.xpose.msra.mxu0 0.0
        %713 = vmatprep.subr.mxu0 0.0
        %714 = vmatpush2.xpose.msra.mxu0 0.0
        %715 = vmatprep.subr.mxu0 0.0
        %716 = vmatpush2.xpose.msra.mxu0 0.0
        %717 = vmatprep.subr.mxu0 0.0
        %718 = vmatpush2.xpose.msra.mxu0 0.0
        %719 = vmatprep.subr.mxu0 0.0
        %720 = vmatpush2.xpose.msra.mxu0 0.0
        %721 = vmatprep.mubr.f32.mxu0 0.0
        %722 = vmatmul.mubr.f32.gmra.mxu0 %v649
        %v723 = vpop.f32.mrf.mxu0
        %v724 = vadd.f32 0.0, %v723
        %v725 = vpop.f32.mrf.mxu0
        %726 = vmatprep.mubr.f32.mxu0 0.0
        %727 = vmatmul.mubr.f32.gmra.mxu0 %v651
        %v728 = vpop.f32.mrf.mxu0
        %v729 = vadd.f32 0.0, %v728
        %v730 = vpop.f32.mrf.mxu0
        %731 = vdwg.mxu0
        %v732 = vsel %vm537, %v724, -inf
        %733 = vmax.xlane.f32.xlu0 %v732
        %v734 = vpop.xlane.xlu0 %733
        %v735 = vsel %vm537, %v729, -inf
        %736 = vmax.xlane.f32.xlu0 %v735
        %v737 = vpop.xlane.xlu0 %736
        %v738 = vsub.f32 %v724, %v734
        %v739 = vsub.f32 %v729, %v737
        %v740 = vmul.f32 %v738, 1.442695
        %v741 = vpow.pop %v740
        %v742 = vmul.f32 %v739, 1.442695
        %v743 = vpow.pop %v742
        %v744 = vsel %vm537, %v741, 0.0
        %745 = vadd.xlane.f32.xlu0 %v744
        %v746 = vpop.xlane.xlu0 %745
        %v747 = vsel %vm537, %v743, 0.0
        %748 = vadd.xlane.f32.xlu0 %v747
        %v749 = vpop.xlane.xlu0 %748
        %v750 = vrcp.pop %v746
        %v751 = vrcp.pop %v749
        %v752 = vmul.f32 %v741, %v750
        %v753 = vmul.f32 %v743, %v751
        %v755 = vsel %vm537, %v752, 0
        %v758 = vsel %vm537, %v753, 0
        %760 = vmatprep.subr.mxu0 0.0
        %761 = vmatpush1.msra.mxu0 0.0
        %762 = vmatprep.subr.mxu0 0.0
        %763 = vmatpush1.msra.mxu0 0.0
        %764 = vmatprep.subr.mxu0 0.0
        %765 = vmatpush1.msra.mxu0 0.0
        %766 = vmatprep.subr.mxu0 0.0
        %767 = vmatpush1.msra.mxu0 0.0
        %768 = vmatprep.subr.mxu0 0.0
        %769 = vmatpush1.msra.mxu0 0.0
        %770 = vmatprep.subr.mxu0 0.0
        %771 = vmatpush1.msra.mxu0 0.0
        %772 = vmatprep.subr.mxu0 0.0
        %773 = vmatpush1.msra.mxu0 0.0
        %774 = vmatprep.subr.mxu0 0.0
        %775 = vmatpush1.msra.mxu0 0.0
        %776 = vmatprep.subr.mxu0 0.0
        %777 = vmatpush1.msra.mxu0 0.0
        %778 = vmatprep.subr.mxu0 0.0
        %779 = vmatpush1.msra.mxu0 0.0
        %780 = vmatprep.subr.mxu0 0.0
        %781 = vmatpush1.msra.mxu0 0.0
        %782 = vmatprep.subr.mxu0 0.0
        %783 = vmatpush1.msra.mxu0 0.0
        %784 = vmatprep.subr.mxu0 0.0
        %785 = vmatpush1.msra.mxu0 0.0
        %786 = vmatprep.subr.mxu0 0.0
        %787 = vmatpush1.msra.mxu0 0.0
        %788 = vmatprep.subr.mxu0 0.0
        %789 = vmatpush1.msra.mxu0 %v440
        %790 = vmatprep.subr.mxu0 0.0
        %791 = vmatpush1.msra.mxu0 %v434
        %792 = vmatprep.subr.mxu0 0.0
        %793 = vmatpush2.msra.mxu0 0.0
        %794 = vmatprep.subr.mxu0 0.0
        %795 = vmatpush2.msra.mxu0 0.0
        %796 = vmatprep.subr.mxu0 0.0
        %797 = vmatpush2.msra.mxu0 0.0
        %798 = vmatprep.subr.mxu0 0.0
        %799 = vmatpush2.msra.mxu0 0.0
        %800 = vmatprep.subr.mxu0 0.0
        %801 = vmatpush2.msra.mxu0 0.0
        %802 = vmatprep.subr.mxu0 0.0
        %803 = vmatpush2.msra.mxu0 0.0
        %804 = vmatprep.subr.mxu0 0.0
        %805 = vmatpush2.msra.mxu0 0.0
        %806 = vmatprep.subr.mxu0 0.0
        %807 = vmatpush2.msra.mxu0 0.0
        %808 = vmatprep.subr.mxu0 0.0
        %809 = vmatpush2.msra.mxu0 0.0
        %810 = vmatprep.subr.mxu0 0.0
        %811 = vmatpush2.msra.mxu0 0.0
        %812 = vmatprep.subr.mxu0 0.0
        %813 = vmatpush2.msra.mxu0 0.0
        %814 = vmatprep.subr.mxu0 0.0
        %815 = vmatpush2.msra.mxu0 0.0
        %816 = vmatprep.subr.mxu0 0.0
        %817 = vmatpush2.msra.mxu0 0.0
        %818 = vmatprep.subr.mxu0 0.0
        %819 = vmatpush2.msra.mxu0 0.0
        %820 = vmatprep.subr.mxu0 0.0
        %821 = vmatpush2.msra.mxu0 0.0
        %822 = vmatprep.subr.mxu0 0.0
        %823 = vmatpush2.msra.mxu0 0.0
        %824 = vmatprep.mubr.f32.mxu0 0.0
        %825 = vmatmul.mubr.f32.gmra.mxu0 %v755
        %v826 = vpop.f32.mrf.mxu0
        %v827 = vadd.f32 0.0, %v826
        %v828 = vpop.f32.mrf.mxu0
        %829 = vmatprep.mubr.f32.mxu0 0.0
        %830 = vmatmul.mubr.f32.gmra.mxu0 %v758
        %v831 = vpop.f32.mrf.mxu0
        %v832 = vadd.f32 0.0, %v831
        %v833 = vpop.f32.mrf.mxu0
        %834 = vdwg.mxu0
        %v835 = vstv %s327
        %v836 = vmul.f32 %v835, %v827
        %v837 = vmul.f32 %v835, %v832
        %v838 = vsub.f32 %v633, %v836
        %v839 = vsub.f32 %v638, %v837
        %v840 = vmul.f32 %v838, %v838
        %v841 = vmul.f32 %v839, %v839
        %v842 = vsel %vm537, %v840, 0.0
        %843 = vadd.xlane.f32.xlu0 %v842
        %v844 = vpop.xlane.xlu0 %843
        %v845 = vsel %vm537, %v841, 0.0
        %846 = vadd.xlane.f32.xlu0 %v845
        %v847 = vpop.xlane.xlu0 %846
        %v848 = vrcp.pop 16.0
        %v849 = vmul.f32 %v844, %v848
        %v850 = vmul.f32 %v847, %v848
        %v851 = vadd.f32 %v849, 1e-05
        %v852 = vadd.f32 %v850, 1e-05
        %v853 = vrsqrt.pop %v851
        %v854 = vrsqrt.pop %v852
        %v855 = vmul.f32 %v838, %v853
        %v856 = vmul.f32 %v839, %v854
        %v858 = vlaneseq
        %v859 = vshrl.u32 %v858, 7
        %v860 = vsub.s32 0, %v859
        %v861 = vrot.slane %v442, %v860
        %v863 = vmul.f32 %v855, %v861
        %v864 = vmul.f32 %v856, %v861
        %v865 = vmul.f32 %v863, 0.64449096
        %v866 = vmul.f32 %v864, 0.64449096
        %867 = vrot.lane.b32.xlu0 %v443, 112
        %v868 = vpop.permute.xlu0 %867
        %869 = vrot.lane.b32.xlu0 %v444, 112
        %v870 = vpop.permute.xlu0 %869
        %871 = vrot.lane.b32.xlu0 %v432, 48
        %v872 = vpop.permute.xlu0 %871
        %873 = vrot.lane.b32.xlu0 %v438, 48
        %v874 = vpop.permute.xlu0 %873
        %v875 = vsel %vm451, %v868, 0
        %v877 = vsel %vm451, %v870, 0
        %v879 = vsel %vm451, %v872, 0
        %v881 = vsel %vm451, %v874, 0
        %883 = vmatprep.subr.mxu0 0.0
        %884 = vmatpush1.xpose.msra.mxu0 0.0
        %885 = vmatprep.subr.mxu0 0.0
        %886 = vmatpush1.xpose.msra.mxu0 0.0
        %887 = vmatprep.subr.mxu0 0.0
        %888 = vmatpush1.xpose.msra.mxu0 0.0
        %889 = vmatprep.subr.mxu0 0.0
        %890 = vmatpush1.xpose.msra.mxu0 0.0
        %891 = vmatprep.subr.mxu0 0.0
        %892 = vmatpush1.xpose.msra.mxu0 0.0
        %893 = vmatprep.subr.mxu0 0.0
        %894 = vmatpush1.xpose.msra.mxu0 0.0
        %895 = vmatprep.subr.mxu0 0.0
        %896 = vmatpush1.xpose.msra.mxu0 0.0
        %897 = vmatprep.subr.mxu0 0.0
        %898 = vmatpush1.xpose.msra.mxu0 0.0
        %899 = vmatprep.subr.mxu0 0.0
        %900 = vmatpush1.xpose.msra.mxu0 0.0
        %901 = vmatprep.subr.mxu0 0.0
        %902 = vmatpush1.xpose.msra.mxu0 0.0
        %903 = vmatprep.subr.mxu0 0.0
        %904 = vmatpush1.xpose.msra.mxu0 0.0
        %905 = vmatprep.subr.mxu0 0.0
        %906 = vmatpush1.xpose.msra.mxu0 0.0
        %907 = vmatprep.subr.mxu0 0.0
        %908 = vmatpush1.xpose.msra.mxu0 0.0
        %909 = vmatprep.subr.mxu0 0.0
        %910 = vmatpush1.xpose.msra.mxu0 0.0
        %911 = vmatprep.subr.mxu0 0.0
        %912 = vmatpush1.xpose.msra.mxu0 %v881
        %913 = vmatprep.subr.mxu0 0.0
        %914 = vmatpush1.xpose.msra.mxu0 %v879
        %915 = vmatprep.subr.mxu0 0.0
        %916 = vmatpush2.xpose.msra.mxu0 0.0
        %917 = vmatprep.subr.mxu0 0.0
        %918 = vmatpush2.xpose.msra.mxu0 0.0
        %919 = vmatprep.subr.mxu0 0.0
        %920 = vmatpush2.xpose.msra.mxu0 0.0
        %921 = vmatprep.subr.mxu0 0.0
        %922 = vmatpush2.xpose.msra.mxu0 0.0
        %923 = vmatprep.subr.mxu0 0.0
        %924 = vmatpush2.xpose.msra.mxu0 0.0
        %925 = vmatprep.subr.mxu0 0.0
        %926 = vmatpush2.xpose.msra.mxu0 0.0
        %927 = vmatprep.subr.mxu0 0.0
        %928 = vmatpush2.xpose.msra.mxu0 0.0
        %929 = vmatprep.subr.mxu0 0.0
        %930 = vmatpush2.xpose.msra.mxu0 0.0
        %931 = vmatprep.subr.mxu0 0.0
        %932 = vmatpush2.xpose.msra.mxu0 0.0
        %933 = vmatprep.subr.mxu0 0.0
        %934 = vmatpush2.xpose.msra.mxu0 0.0
        %935 = vmatprep.subr.mxu0 0.0
        %936 = vmatpush2.xpose.msra.mxu0 0.0
        %937 = vmatprep.subr.mxu0 0.0
        %938 = vmatpush2.xpose.msra.mxu0 0.0
        %939 = vmatprep.subr.mxu0 0.0
        %940 = vmatpush2.xpose.msra.mxu0 0.0
        %941 = vmatprep.subr.mxu0 0.0
        %942 = vmatpush2.xpose.msra.mxu0 0.0
        %943 = vmatprep.subr.mxu0 0.0
        %944 = vmatpush2.xpose.msra.mxu0 0.0
        %945 = vmatprep.subr.mxu0 0.0
        %946 = vmatpush2.xpose.msra.mxu0 0.0
        %947 = vmatprep.mubr.f32.mxu0 0.0
        %948 = vmatmul.mubr.f32.gmra.mxu0 %v875
        %v949 = vpop.f32.mrf.mxu0
        %v950 = vadd.f32 0.0, %v949
        %v951 = vpop.f32.mrf.mxu0
        %952 = vmatprep.mubr.f32.mxu0 0.0
        %953 = vmatmul.mubr.f32.gmra.mxu0 %v877
        %v954 = vpop.f32.mrf.mxu0
        %v955 = vadd.f32 0.0, %v954
        %v956 = vpop.f32.mrf.mxu0
        %957 = vdwg.mxu0
        %v958 = vsel %vm537, %v950, -inf
        %959 = vmax.xlane.f32.xlu0 %v958
        %v960 = vpop.xlane.xlu0 %959
        %v961 = vsel %vm537, %v955, -inf
        %962 = vmax.xlane.f32.xlu0 %v961
        %v963 = vpop.xlane.xlu0 %962
        %v964 = vsub.f32 %v950, %v960
        %v965 = vsub.f32 %v955, %v963
        %v966 = vmul.f32 %v964, 1.442695
        %v967 = vpow.pop %v966
        %v968 = vmul.f32 %v965, 1.442695
        %v969 = vpow.pop %v968
        %v970 = vsel %vm537, %v967, 0.0
        %971 = vadd.xlane.f32.xlu0 %v970
        %v972 = vpop.xlane.xlu0 %971
        %v973 = vsel %vm537, %v969, 0.0
        %974 = vadd.xlane.f32.xlu0 %v973
        %v975 = vpop.xlane.xlu0 %974
        %v976 = vrcp.pop %v972
        %v977 = vrcp.pop %v975
        %v978 = vmul.f32 %v967, %v976
        %v979 = vmul.f32 %v969, %v977
        %982 = vrot.lane.b32.xlu0 %v434, 112
        %v983 = vpop.permute.xlu0 %982
        %984 = vrot.lane.b32.xlu0 %v440, 112
        %v985 = vpop.permute.xlu0 %984
        %v989 = vsel %vm537, %v978, 0
        %v992 = vsel %vm537, %v979, 0
        %994 = vmatprep.subr.mxu0 0.0
        %995 = vmatpush1.msra.mxu0 0.0
        %996 = vmatprep.subr.mxu0 0.0
        %997 = vmatpush1.msra.mxu0 0.0
        %998 = vmatprep.subr.mxu0 0.0
        %999 = vmatpush1.msra.mxu0 0.0
        %1000 = vmatprep.subr.mxu0 0.0
        %1001 = vmatpush1.msra.mxu0 0.0
        %1002 = vmatprep.subr.mxu0 0.0
        %1003 = vmatpush1.msra.mxu0 0.0
        %1004 = vmatprep.subr.mxu0 0.0
        %1005 = vmatpush1.msra.mxu0 0.0
        %1006 = vmatprep.subr.mxu0 0.0
        %1007 = vmatpush1.msra.mxu0 0.0
        %1008 = vmatprep.subr.mxu0 0.0
        %1009 = vmatpush1.msra.mxu0 0.0
        %1010 = vmatprep.subr.mxu0 0.0
        %1011 = vmatpush1.msra.mxu0 0.0
        %1012 = vmatprep.subr.mxu0 0.0
        %1013 = vmatpush1.msra.mxu0 0.0
        %1014 = vmatprep.subr.mxu0 0.0
        %1015 = vmatpush1.msra.mxu0 0.0
        %1016 = vmatprep.subr.mxu0 0.0
        %1017 = vmatpush1.msra.mxu0 0.0
        %1018 = vmatprep.subr.mxu0 0.0
        %1019 = vmatpush1.msra.mxu0 0.0
        %1020 = vmatprep.subr.mxu0 0.0
        %1021 = vmatpush1.msra.mxu0 0.0
        %1022 = vmatprep.subr.mxu0 0.0
        %1023 = vmatpush1.msra.mxu0 %v985
        %1024 = vmatprep.subr.mxu0 0.0
        %1025 = vmatpush1.msra.mxu0 %v983
        %1026 = vmatprep.subr.mxu0 0.0
        %1027 = vmatpush2.msra.mxu0 0.0
        %1028 = vmatprep.subr.mxu0 0.0
        %1029 = vmatpush2.msra.mxu0 0.0
        %1030 = vmatprep.subr.mxu0 0.0
        %1031 = vmatpush2.msra.mxu0 0.0
        %1032 = vmatprep.subr.mxu0 0.0
        %1033 = vmatpush2.msra.mxu0 0.0
        %1034 = vmatprep.subr.mxu0 0.0
        %1035 = vmatpush2.msra.mxu0 0.0
        %1036 = vmatprep.subr.mxu0 0.0
        %1037 = vmatpush2.msra.mxu0 0.0
        %1038 = vmatprep.subr.mxu0 0.0
        %1039 = vmatpush2.msra.mxu0 0.0
        %1040 = vmatprep.subr.mxu0 0.0
        %1041 = vmatpush2.msra.mxu0 0.0
        %1042 = vmatprep.subr.mxu0 0.0
        %1043 = vmatpush2.msra.mxu0 0.0
        %1044 = vmatprep.subr.mxu0 0.0
        %1045 = vmatpush2.msra.mxu0 0.0
        %1046 = vmatprep.subr.mxu0 0.0
        %1047 = vmatpush2.msra.mxu0 0.0
        %1048 = vmatprep.subr.mxu0 0.0
        %1049 = vmatpush2.msra.mxu0 0.0
        %1050 = vmatprep.subr.mxu0 0.0
        %1051 = vmatpush2.msra.mxu0 0.0
        %1052 = vmatprep.subr.mxu0 0.0
        %1053 = vmatpush2.msra.mxu0 0.0
        %1054 = vmatprep.subr.mxu0 0.0
        %1055 = vmatpush2.msra.mxu0 0.0
        %1056 = vmatprep.subr.mxu0 0.0
        %1057 = vmatpush2.msra.mxu0 0.0
        %1058 = vmatprep.mubr.f32.mxu0 0.0
        %1059 = vmatmul.mubr.f32.gmra.mxu0 %v989
        %v1060 = vpop.f32.mrf.mxu0
        %v1061 = vadd.f32 0.0, %v1060
        %v1062 = vpop.f32.mrf.mxu0
        %1063 = vmatprep.mubr.f32.mxu0 0.0
        %1064 = vmatmul.mubr.f32.gmra.mxu0 %v992
        %v1065 = vpop.f32.mrf.mxu0
        %v1066 = vadd.f32 0.0, %v1065
        %v1067 = vpop.f32.mrf.mxu0
        %1068 = vdwg.mxu0
        %1069 = vrot.lane.b32.xlu0 %v443, 104
        %v1070 = vpop.permute.xlu0 %1069
        %1071 = vrot.lane.b32.xlu0 %v444, 104
        %v1072 = vpop.permute.xlu0 %1071
        %1073 = vrot.lane.b32.xlu0 %v432, 40
        %v1074 = vpop.permute.xlu0 %1073
        %1075 = vrot.lane.b32.xlu0 %v438, 40
        %v1076 = vpop.permute.xlu0 %1075
        %v1077 = vsel %vm451, %v1070, 0
        %v1079 = vsel %vm451, %v1072, 0
        %v1081 = vsel %vm451, %v1074, 0
        %v1083 = vsel %vm451, %v1076, 0
        %1085 = vmatprep.subr.mxu0 0.0
        %1086 = vmatpush1.xpose.msra.mxu0 0.0
        %1087 = vmatprep.subr.mxu0 0.0
        %1088 = vmatpush1.xpose.msra.mxu0 0.0
        %1089 = vmatprep.subr.mxu0 0.0
        %1090 = vmatpush1.xpose.msra.mxu0 0.0
        %1091 = vmatprep.subr.mxu0 0.0
        %1092 = vmatpush1.xpose.msra.mxu0 0.0
        %1093 = vmatprep.subr.mxu0 0.0
        %1094 = vmatpush1.xpose.msra.mxu0 0.0
        %1095 = vmatprep.subr.mxu0 0.0
        %1096 = vmatpush1.xpose.msra.mxu0 0.0
        %1097 = vmatprep.subr.mxu0 0.0
        %1098 = vmatpush1.xpose.msra.mxu0 0.0
        %1099 = vmatprep.subr.mxu0 0.0
        %1100 = vmatpush1.xpose.msra.mxu0 0.0
        %1101 = vmatprep.subr.mxu0 0.0
        %1102 = vmatpush1.xpose.msra.mxu0 0.0
        %1103 = vmatprep.subr.mxu0 0.0
        %1104 = vmatpush1.xpose.msra.mxu0 0.0
        %1105 = vmatprep.subr.mxu0 0.0
        %1106 = vmatpush1.xpose.msra.mxu0 0.0
        %1107 = vmatprep.subr.mxu0 0.0
        %1108 = vmatpush1.xpose.msra.mxu0 0.0
        %1109 = vmatprep.subr.mxu0 0.0
        %1110 = vmatpush1.xpose.msra.mxu0 0.0
        %1111 = vmatprep.subr.mxu0 0.0
        %1112 = vmatpush1.xpose.msra.mxu0 0.0
        %1113 = vmatprep.subr.mxu0 0.0
        %1114 = vmatpush1.xpose.msra.mxu0 %v1083
        %1115 = vmatprep.subr.mxu0 0.0
        %1116 = vmatpush1.xpose.msra.mxu0 %v1081
        %1117 = vmatprep.subr.mxu0 0.0
        %1118 = vmatpush2.xpose.msra.mxu0 0.0
        %1119 = vmatprep.subr.mxu0 0.0
        %1120 = vmatpush2.xpose.msra.mxu0 0.0
        %1121 = vmatprep.subr.mxu0 0.0
        %1122 = vmatpush2.xpose.msra.mxu0 0.0
        %1123 = vmatprep.subr.mxu0 0.0
        %1124 = vmatpush2.xpose.msra.mxu0 0.0
        %1125 = vmatprep.subr.mxu0 0.0
        %1126 = vmatpush2.xpose.msra.mxu0 0.0
        %1127 = vmatprep.subr.mxu0 0.0
        %1128 = vmatpush2.xpose.msra.mxu0 0.0
        %1129 = vmatprep.subr.mxu0 0.0
        %1130 = vmatpush2.xpose.msra.mxu0 0.0
        %1131 = vmatprep.subr.mxu0 0.0
        %1132 = vmatpush2.xpose.msra.mxu0 0.0
        %1133 = vmatprep.subr.mxu0 0.0
        %1134 = vmatpush2.xpose.msra.mxu0 0.0
        %1135 = vmatprep.subr.mxu0 0.0
        %1136 = vmatpush2.xpose.msra.mxu0 0.0
        %1137 = vmatprep.subr.mxu0 0.0
        %1138 = vmatpush2.xpose.msra.mxu0 0.0
        %1139 = vmatprep.subr.mxu0 0.0
        %1140 = vmatpush2.xpose.msra.mxu0 0.0
        %1141 = vmatprep.subr.mxu0 0.0
        %1142 = vmatpush2.xpose.msra.mxu0 0.0
        %1143 = vmatprep.subr.mxu0 0.0
        %1144 = vmatpush2.xpose.msra.mxu0 0.0
        %1145 = vmatprep.subr.mxu0 0.0
        %1146 = vmatpush2.xpose.msra.mxu0 0.0
        %1147 = vmatprep.subr.mxu0 0.0
        %1148 = vmatpush2.xpose.msra.mxu0 0.0
        %1149 = vmatprep.mubr.f32.mxu0 0.0
        %1150 = vmatmul.mubr.f32.gmra.mxu0 %v1077
        %v1151 = vpop.f32.mrf.mxu0
        %v1152 = vadd.f32 0.0, %v1151
        %v1153 = vpop.f32.mrf.mxu0
        %1154 = vmatprep.mubr.f32.mxu0 0.0
        %1155 = vmatmul.mubr.f32.gmra.mxu0 %v1079
        %v1156 = vpop.f32.mrf.mxu0
        %v1157 = vadd.f32 0.0, %v1156
        %v1158 = vpop.f32.mrf.mxu0
        %1159 = vdwg.mxu0
        %v1160 = vsel %vm537, %v1152, -inf
        %1161 = vmax.xlane.f32.xlu0 %v1160
        %v1162 = vpop.xlane.xlu0 %1161
        %v1163 = vsel %vm537, %v1157, -inf
        %1164 = vmax.xlane.f32.xlu0 %v1163
        %v1165 = vpop.xlane.xlu0 %1164
        %v1166 = vsub.f32 %v1152, %v1162
        %v1167 = vsub.f32 %v1157, %v1165
        %v1168 = vmul.f32 %v1166, 1.442695
        %v1169 = vpow.pop %v1168
        %v1170 = vmul.f32 %v1167, 1.442695
        %v1171 = vpow.pop %v1170
        %v1172 = vsel %vm537, %v1169, 0.0
        %1173 = vadd.xlane.f32.xlu0 %v1172
        %v1174 = vpop.xlane.xlu0 %1173
        %v1175 = vsel %vm537, %v1171, 0.0
        %1176 = vadd.xlane.f32.xlu0 %v1175
        %v1177 = vpop.xlane.xlu0 %1176
        %v1178 = vrcp.pop %v1174
        %v1179 = vrcp.pop %v1177
        %v1180 = vmul.f32 %v1169, %v1178
        %v1181 = vmul.f32 %v1171, %v1179
        %v1183 = vsel %vm537, %v1180, 0
        %v1186 = vsel %vm537, %v1181, 0
        %1188 = vmatprep.subr.mxu0 0.0
        %1189 = vmatpush1.msra.mxu0 0.0
        %1190 = vmatprep.subr.mxu0 0.0
        %1191 = vmatpush1.msra.mxu0 0.0
        %1192 = vmatprep.subr.mxu0 0.0
        %1193 = vmatpush1.msra.mxu0 0.0
        %1194 = vmatprep.subr.mxu0 0.0
        %1195 = vmatpush1.msra.mxu0 0.0
        %1196 = vmatprep.subr.mxu0 0.0
        %1197 = vmatpush1.msra.mxu0 0.0
        %1198 = vmatprep.subr.mxu0 0.0
        %1199 = vmatpush1.msra.mxu0 0.0
        %1200 = vmatprep.subr.mxu0 0.0
        %1201 = vmatpush1.msra.mxu0 0.0
        %1202 = vmatprep.subr.mxu0 0.0
        %1203 = vmatpush1.msra.mxu0 0.0
        %1204 = vmatprep.subr.mxu0 0.0
        %1205 = vmatpush1.msra.mxu0 0.0
        %1206 = vmatprep.subr.mxu0 0.0
        %1207 = vmatpush1.msra.mxu0 0.0
        %1208 = vmatprep.subr.mxu0 0.0
        %1209 = vmatpush1.msra.mxu0 0.0
        %1210 = vmatprep.subr.mxu0 0.0
        %1211 = vmatpush1.msra.mxu0 0.0
        %1212 = vmatprep.subr.mxu0 0.0
        %1213 = vmatpush1.msra.mxu0 0.0
        %1214 = vmatprep.subr.mxu0 0.0
        %1215 = vmatpush1.msra.mxu0 0.0
        %1216 = vmatprep.subr.mxu0 0.0
        %1217 = vmatpush1.msra.mxu0 %v985
        %1218 = vmatprep.subr.mxu0 0.0
        %1219 = vmatpush1.msra.mxu0 %v983
        %1220 = vmatprep.subr.mxu0 0.0
        %1221 = vmatpush2.msra.mxu0 0.0
        %1222 = vmatprep.subr.mxu0 0.0
        %1223 = vmatpush2.msra.mxu0 0.0
        %1224 = vmatprep.subr.mxu0 0.0
        %1225 = vmatpush2.msra.mxu0 0.0
        %1226 = vmatprep.subr.mxu0 0.0
        %1227 = vmatpush2.msra.mxu0 0.0
        %1228 = vmatprep.subr.mxu0 0.0
        %1229 = vmatpush2.msra.mxu0 0.0
        %1230 = vmatprep.subr.mxu0 0.0
        %1231 = vmatpush2.msra.mxu0 0.0
        %1232 = vmatprep.subr.mxu0 0.0
        %1233 = vmatpush2.msra.mxu0 0.0
        %1234 = vmatprep.subr.mxu0 0.0
        %1235 = vmatpush2.msra.mxu0 0.0
        %1236 = vmatprep.subr.mxu0 0.0
        %1237 = vmatpush2.msra.mxu0 0.0
        %1238 = vmatprep.subr.mxu0 0.0
        %1239 = vmatpush2.msra.mxu0 0.0
        %1240 = vmatprep.subr.mxu0 0.0
        %1241 = vmatpush2.msra.mxu0 0.0
        %1242 = vmatprep.subr.mxu0 0.0
        %1243 = vmatpush2.msra.mxu0 0.0
        %1244 = vmatprep.subr.mxu0 0.0
        %1245 = vmatpush2.msra.mxu0 0.0
        %1246 = vmatprep.subr.mxu0 0.0
        %1247 = vmatpush2.msra.mxu0 0.0
        %1248 = vmatprep.subr.mxu0 0.0
        %1249 = vmatpush2.msra.mxu0 0.0
        %1250 = vmatprep.subr.mxu0 0.0
        %1251 = vmatpush2.msra.mxu0 0.0
        %1252 = vmatprep.mubr.f32.mxu0 0.0
        %1253 = vmatmul.mubr.f32.gmra.mxu0 %v1183
        %v1254 = vpop.f32.mrf.mxu0
        %v1255 = vadd.f32 0.0, %v1254
        %v1256 = vpop.f32.mrf.mxu0
        %1257 = vmatprep.mubr.f32.mxu0 0.0
        %1258 = vmatmul.mubr.f32.gmra.mxu0 %v1186
        %v1259 = vpop.f32.mrf.mxu0
        %v1260 = vadd.f32 0.0, %v1259
        %v1261 = vpop.f32.mrf.mxu0
        %1262 = vdwg.mxu0
        %v1263 = vmul.f32 %v835, %v1255
        %v1264 = vmul.f32 %v835, %v1260
        %v1265 = vsub.f32 %v1061, %v1263
        %v1266 = vsub.f32 %v1066, %v1264
        %v1267 = vmul.f32 %v1265, %v1265
        %v1268 = vmul.f32 %v1266, %v1266
        %v1269 = vsel %vm537, %v1267, 0.0
        %1270 = vadd.xlane.f32.xlu0 %v1269
        %v1271 = vpop.xlane.xlu0 %1270
        %v1272 = vsel %vm537, %v1268, 0.0
        %1273 = vadd.xlane.f32.xlu0 %v1272
        %v1274 = vpop.xlane.xlu0 %1273
        %v1275 = vmul.f32 %v1271, %v848
        %v1276 = vmul.f32 %v1274, %v848
        %v1277 = vadd.f32 %v1275, 1e-05
        %v1278 = vadd.f32 %v1276, 1e-05
        %v1279 = vrsqrt.pop %v1277
        %v1280 = vrsqrt.pop %v1278
        %v1281 = vmul.f32 %v1265, %v1279
        %v1282 = vmul.f32 %v1266, %v1280
        %v1283 = vmul.f32 %v1281, %v861
        %v1284 = vmul.f32 %v1282, %v861
        %v1285 = vmul.f32 %v1283, 0.64449096
        %v1286 = vmul.f32 %v1284, 0.64449096
        %1287 = vrot.lane.b32.xlu0 %v443, 96
        %v1288 = vpop.permute.xlu0 %1287
        %1289 = vrot.lane.b32.xlu0 %v444, 96
        %v1290 = vpop.permute.xlu0 %1289
        %1291 = vrot.lane.b32.xlu0 %v432, 32
        %v1292 = vpop.permute.xlu0 %1291
        %1293 = vrot.lane.b32.xlu0 %v438, 32
        %v1294 = vpop.permute.xlu0 %1293
        %v1295 = vsel %vm451, %v1288, 0
        %v1297 = vsel %vm451, %v1290, 0
        %v1299 = vsel %vm451, %v1292, 0
        %v1301 = vsel %vm451, %v1294, 0
        %1303 = vmatprep.subr.mxu0 0.0
        %1304 = vmatpush1.xpose.msra.mxu0 0.0
        %1305 = vmatprep.subr.mxu0 0.0
        %1306 = vmatpush1.xpose.msra.mxu0 0.0
        %1307 = vmatprep.subr.mxu0 0.0
        %1308 = vmatpush1.xpose.msra.mxu0 0.0
        %1309 = vmatprep.subr.mxu0 0.0
        %1310 = vmatpush1.xpose.msra.mxu0 0.0
        %1311 = vmatprep.subr.mxu0 0.0
        %1312 = vmatpush1.xpose.msra.mxu0 0.0
        %1313 = vmatprep.subr.mxu0 0.0
        %1314 = vmatpush1.xpose.msra.mxu0 0.0
        %1315 = vmatprep.subr.mxu0 0.0
        %1316 = vmatpush1.xpose.msra.mxu0 0.0
        %1317 = vmatprep.subr.mxu0 0.0
        %1318 = vmatpush1.xpose.msra.mxu0 0.0
        %1319 = vmatprep.subr.mxu0 0.0
        %1320 = vmatpush1.xpose.msra.mxu0 0.0
        %1321 = vmatprep.subr.mxu0 0.0
        %1322 = vmatpush1.xpose.msra.mxu0 0.0
        %1323 = vmatprep.subr.mxu0 0.0
        %1324 = vmatpush1.xpose.msra.mxu0 0.0
        %1325 = vmatprep.subr.mxu0 0.0
        %1326 = vmatpush1.xpose.msra.mxu0 0.0
        %1327 = vmatprep.subr.mxu0 0.0
        %1328 = vmatpush1.xpose.msra.mxu0 0.0
        %1329 = vmatprep.subr.mxu0 0.0
        %1330 = vmatpush1.xpose.msra.mxu0 0.0
        %1331 = vmatprep.subr.mxu0 0.0
        %1332 = vmatpush1.xpose.msra.mxu0 %v1301
        %1333 = vmatprep.subr.mxu0 0.0
        %1334 = vmatpush1.xpose.msra.mxu0 %v1299
        %1335 = vmatprep.subr.mxu0 0.0
        %1336 = vmatpush2.xpose.msra.mxu0 0.0
        %1337 = vmatprep.subr.mxu0 0.0
        %1338 = vmatpush2.xpose.msra.mxu0 0.0
        %1339 = vmatprep.subr.mxu0 0.0
        %1340 = vmatpush2.xpose.msra.mxu0 0.0
        %1341 = vmatprep.subr.mxu0 0.0
        %1342 = vmatpush2.xpose.msra.mxu0 0.0
        %1343 = vmatprep.subr.mxu0 0.0
        %1344 = vmatpush2.xpose.msra.mxu0 0.0
        %1345 = vmatprep.subr.mxu0 0.0
        %1346 = vmatpush2.xpose.msra.mxu0 0.0
        %1347 = vmatprep.subr.mxu0 0.0
        %1348 = vmatpush2.xpose.msra.mxu0 0.0
        %1349 = vmatprep.subr.mxu0 0.0
        %1350 = vmatpush2.xpose.msra.mxu0 0.0
        %1351 = vmatprep.subr.mxu0 0.0
        %1352 = vmatpush2.xpose.msra.mxu0 0.0
        %1353 = vmatprep.subr.mxu0 0.0
        %1354 = vmatpush2.xpose.msra.mxu0 0.0
        %1355 = vmatprep.subr.mxu0 0.0
        %1356 = vmatpush2.xpose.msra.mxu0 0.0
        %1357 = vmatprep.subr.mxu0 0.0
        %1358 = vmatpush2.xpose.msra.mxu0 0.0
        %1359 = vmatprep.subr.mxu0 0.0
        %1360 = vmatpush2.xpose.msra.mxu0 0.0
        %1361 = vmatprep.subr.mxu0 0.0
        %1362 = vmatpush2.xpose.msra.mxu0 0.0
        %1363 = vmatprep.subr.mxu0 0.0
        %1364 = vmatpush2.xpose.msra.mxu0 0.0
        %1365 = vmatprep.subr.mxu0 0.0
        %1366 = vmatpush2.xpose.msra.mxu0 0.0
        %1367 = vmatprep.mubr.f32.mxu0 0.0
        %1368 = vmatmul.mubr.f32.gmra.mxu0 %v1295
        %v1369 = vpop.f32.mrf.mxu0
        %v1370 = vadd.f32 0.0, %v1369
        %v1371 = vpop.f32.mrf.mxu0
        %1372 = vmatprep.mubr.f32.mxu0 0.0
        %1373 = vmatmul.mubr.f32.gmra.mxu0 %v1297
        %v1374 = vpop.f32.mrf.mxu0
        %v1375 = vadd.f32 0.0, %v1374
        %v1376 = vpop.f32.mrf.mxu0
        %1377 = vdwg.mxu0
        %v1378 = vsel %vm537, %v1370, -inf
        %1379 = vmax.xlane.f32.xlu0 %v1378
        %v1380 = vpop.xlane.xlu0 %1379
        %v1381 = vsel %vm537, %v1375, -inf
        %1382 = vmax.xlane.f32.xlu0 %v1381
        %v1383 = vpop.xlane.xlu0 %1382
        %v1384 = vsub.f32 %v1370, %v1380
        %v1385 = vsub.f32 %v1375, %v1383
        %v1386 = vmul.f32 %v1384, 1.442695
        %v1387 = vpow.pop %v1386
        %v1388 = vmul.f32 %v1385, 1.442695
        %v1389 = vpow.pop %v1388
        %v1390 = vsel %vm537, %v1387, 0.0
        %1391 = vadd.xlane.f32.xlu0 %v1390
        %v1392 = vpop.xlane.xlu0 %1391
        %v1393 = vsel %vm537, %v1389, 0.0
        %1394 = vadd.xlane.f32.xlu0 %v1393
        %v1395 = vpop.xlane.xlu0 %1394
        %v1396 = vrcp.pop %v1392
        %v1397 = vrcp.pop %v1395
        %v1398 = vmul.f32 %v1387, %v1396
        %v1399 = vmul.f32 %v1389, %v1397
        %1400 = vrot.lane.b32.xlu0 %v434, 96
        %v1401 = vpop.permute.xlu0 %1400
        %1402 = vrot.lane.b32.xlu0 %v440, 96
        %v1403 = vpop.permute.xlu0 %1402
        %v1407 = vsel %vm537, %v1398, 0
        %v1410 = vsel %vm537, %v1399, 0
        %1412 = vmatprep.subr.mxu0 0.0
        %1413 = vmatpush1.msra.mxu0 0.0
        %1414 = vmatprep.subr.mxu0 0.0
        %1415 = vmatpush1.msra.mxu0 0.0
        %1416 = vmatprep.subr.mxu0 0.0
        %1417 = vmatpush1.msra.mxu0 0.0
        %1418 = vmatprep.subr.mxu0 0.0
        %1419 = vmatpush1.msra.mxu0 0.0
        %1420 = vmatprep.subr.mxu0 0.0
        %1421 = vmatpush1.msra.mxu0 0.0
        %1422 = vmatprep.subr.mxu0 0.0
        %1423 = vmatpush1.msra.mxu0 0.0
        %1424 = vmatprep.subr.mxu0 0.0
        %1425 = vmatpush1.msra.mxu0 0.0
        %1426 = vmatprep.subr.mxu0 0.0
        %1427 = vmatpush1.msra.mxu0 0.0
        %1428 = vmatprep.subr.mxu0 0.0
        %1429 = vmatpush1.msra.mxu0 0.0
        %1430 = vmatprep.subr.mxu0 0.0
        %1431 = vmatpush1.msra.mxu0 0.0
        %1432 = vmatprep.subr.mxu0 0.0
        %1433 = vmatpush1.msra.mxu0 0.0
        %1434 = vmatprep.subr.mxu0 0.0
        %1435 = vmatpush1.msra.mxu0 0.0
        %1436 = vmatprep.subr.mxu0 0.0
        %1437 = vmatpush1.msra.mxu0 0.0
        %1438 = vmatprep.subr.mxu0 0.0
        %1439 = vmatpush1.msra.mxu0 0.0
        %1440 = vmatprep.subr.mxu0 0.0
        %1441 = vmatpush1.msra.mxu0 %v1403
        %1442 = vmatprep.subr.mxu0 0.0
        %1443 = vmatpush1.msra.mxu0 %v1401
        %1444 = vmatprep.subr.mxu0 0.0
        %1445 = vmatpush2.msra.mxu0 0.0
        %1446 = vmatprep.subr.mxu0 0.0
        %1447 = vmatpush2.msra.mxu0 0.0
        %1448 = vmatprep.subr.mxu0 0.0
        %1449 = vmatpush2.msra.mxu0 0.0
        %1450 = vmatprep.subr.mxu0 0.0
        %1451 = vmatpush2.msra.mxu0 0.0
        %1452 = vmatprep.subr.mxu0 0.0
        %1453 = vmatpush2.msra.mxu0 0.0
        %1454 = vmatprep.subr.mxu0 0.0
        %1455 = vmatpush2.msra.mxu0 0.0
        %1456 = vmatprep.subr.mxu0 0.0
        %1457 = vmatpush2.msra.mxu0 0.0
        %1458 = vmatprep.subr.mxu0 0.0
        %1459 = vmatpush2.msra.mxu0 0.0
        %1460 = vmatprep.subr.mxu0 0.0
        %1461 = vmatpush2.msra.mxu0 0.0
        %1462 = vmatprep.subr.mxu0 0.0
        %1463 = vmatpush2.msra.mxu0 0.0
        %1464 = vmatprep.subr.mxu0 0.0
        %1465 = vmatpush2.msra.mxu0 0.0
        %1466 = vmatprep.subr.mxu0 0.0
        %1467 = vmatpush2.msra.mxu0 0.0
        %1468 = vmatprep.subr.mxu0 0.0
        %1469 = vmatpush2.msra.mxu0 0.0
        %1470 = vmatprep.subr.mxu0 0.0
        %1471 = vmatpush2.msra.mxu0 0.0
        %1472 = vmatprep.subr.mxu0 0.0
        %1473 = vmatpush2.msra.mxu0 0.0
        %1474 = vmatprep.subr.mxu0 0.0
        %1475 = vmatpush2.msra.mxu0 0.0
        %1476 = vmatprep.mubr.f32.mxu0 0.0
        %1477 = vmatmul.mubr.f32.gmra.mxu0 %v1407
        %v1478 = vpop.f32.mrf.mxu0
        %v1479 = vadd.f32 0.0, %v1478
        %v1480 = vpop.f32.mrf.mxu0
        %1481 = vmatprep.mubr.f32.mxu0 0.0
        %1482 = vmatmul.mubr.f32.gmra.mxu0 %v1410
        %v1483 = vpop.f32.mrf.mxu0
        %v1484 = vadd.f32 0.0, %v1483
        %v1485 = vpop.f32.mrf.mxu0
        %1486 = vdwg.mxu0
        %1487 = vrot.lane.b32.xlu0 %v443, 88
        %v1488 = vpop.permute.xlu0 %1487
        %1489 = vrot.lane.b32.xlu0 %v444, 88
        %v1490 = vpop.permute.xlu0 %1489
        %1491 = vrot.lane.b32.xlu0 %v432, 24
        %v1492 = vpop.permute.xlu0 %1491
        %1493 = vrot.lane.b32.xlu0 %v438, 24
        %v1494 = vpop.permute.xlu0 %1493
        %v1495 = vsel %vm451, %v1488, 0
        %v1497 = vsel %vm451, %v1490, 0
        %v1499 = vsel %vm451, %v1492, 0
        %v1501 = vsel %vm451, %v1494, 0
        %1503 = vmatprep.subr.mxu0 0.0
        %1504 = vmatpush1.xpose.msra.mxu0 0.0
        %1505 = vmatprep.subr.mxu0 0.0
        %1506 = vmatpush1.xpose.msra.mxu0 0.0
        %1507 = vmatprep.subr.mxu0 0.0
        %1508 = vmatpush1.xpose.msra.mxu0 0.0
        %1509 = vmatprep.subr.mxu0 0.0
        %1510 = vmatpush1.xpose.msra.mxu0 0.0
        %1511 = vmatprep.subr.mxu0 0.0
        %1512 = vmatpush1.xpose.msra.mxu0 0.0
        %1513 = vmatprep.subr.mxu0 0.0
        %1514 = vmatpush1.xpose.msra.mxu0 0.0
        %1515 = vmatprep.subr.mxu0 0.0
        %1516 = vmatpush1.xpose.msra.mxu0 0.0
        %1517 = vmatprep.subr.mxu0 0.0
        %1518 = vmatpush1.xpose.msra.mxu0 0.0
        %1519 = vmatprep.subr.mxu0 0.0
        %1520 = vmatpush1.xpose.msra.mxu0 0.0
        %1521 = vmatprep.subr.mxu0 0.0
        %1522 = vmatpush1.xpose.msra.mxu0 0.0
        %1523 = vmatprep.subr.mxu0 0.0
        %1524 = vmatpush1.xpose.msra.mxu0 0.0
        %1525 = vmatprep.subr.mxu0 0.0
        %1526 = vmatpush1.xpose.msra.mxu0 0.0
        %1527 = vmatprep.subr.mxu0 0.0
        %1528 = vmatpush1.xpose.msra.mxu0 0.0
        %1529 = vmatprep.subr.mxu0 0.0
        %1530 = vmatpush1.xpose.msra.mxu0 0.0
        %1531 = vmatprep.subr.mxu0 0.0
        %1532 = vmatpush1.xpose.msra.mxu0 %v1501
        %1533 = vmatprep.subr.mxu0 0.0
        %1534 = vmatpush1.xpose.msra.mxu0 %v1499
        %1535 = vmatprep.subr.mxu0 0.0
        %1536 = vmatpush2.xpose.msra.mxu0 0.0
        %1537 = vmatprep.subr.mxu0 0.0
        %1538 = vmatpush2.xpose.msra.mxu0 0.0
        %1539 = vmatprep.subr.mxu0 0.0
        %1540 = vmatpush2.xpose.msra.mxu0 0.0
        %1541 = vmatprep.subr.mxu0 0.0
        %1542 = vmatpush2.xpose.msra.mxu0 0.0
        %1543 = vmatprep.subr.mxu0 0.0
        %1544 = vmatpush2.xpose.msra.mxu0 0.0
        %1545 = vmatprep.subr.mxu0 0.0
        %1546 = vmatpush2.xpose.msra.mxu0 0.0
        %1547 = vmatprep.subr.mxu0 0.0
        %1548 = vmatpush2.xpose.msra.mxu0 0.0
        %1549 = vmatprep.subr.mxu0 0.0
        %1550 = vmatpush2.xpose.msra.mxu0 0.0
        %1551 = vmatprep.subr.mxu0 0.0
        %1552 = vmatpush2.xpose.msra.mxu0 0.0
        %1553 = vmatprep.subr.mxu0 0.0
        %1554 = vmatpush2.xpose.msra.mxu0 0.0
        %1555 = vmatprep.subr.mxu0 0.0
        %1556 = vmatpush2.xpose.msra.mxu0 0.0
        %1557 = vmatprep.subr.mxu0 0.0
        %1558 = vmatpush2.xpose.msra.mxu0 0.0
        %1559 = vmatprep.subr.mxu0 0.0
        %1560 = vmatpush2.xpose.msra.mxu0 0.0
        %1561 = vmatprep.subr.mxu0 0.0
        %1562 = vmatpush2.xpose.msra.mxu0 0.0
        %1563 = vmatprep.subr.mxu0 0.0
        %1564 = vmatpush2.xpose.msra.mxu0 0.0
        %1565 = vmatprep.subr.mxu0 0.0
        %1566 = vmatpush2.xpose.msra.mxu0 0.0
        %1567 = vmatprep.mubr.f32.mxu0 0.0
        %1568 = vmatmul.mubr.f32.gmra.mxu0 %v1495
        %v1569 = vpop.f32.mrf.mxu0
        %v1570 = vadd.f32 0.0, %v1569
        %v1571 = vpop.f32.mrf.mxu0
        %1572 = vmatprep.mubr.f32.mxu0 0.0
        %1573 = vmatmul.mubr.f32.gmra.mxu0 %v1497
        %v1574 = vpop.f32.mrf.mxu0
        %v1575 = vadd.f32 0.0, %v1574
        %v1576 = vpop.f32.mrf.mxu0
        %1577 = vdwg.mxu0
        %v1578 = vsel %vm537, %v1570, -inf
        %1579 = vmax.xlane.f32.xlu0 %v1578
        %v1580 = vpop.xlane.xlu0 %1579
        %v1581 = vsel %vm537, %v1575, -inf
        %1582 = vmax.xlane.f32.xlu0 %v1581
        %v1583 = vpop.xlane.xlu0 %1582
        %v1584 = vsub.f32 %v1570, %v1580
        %v1585 = vsub.f32 %v1575, %v1583
        %v1586 = vmul.f32 %v1584, 1.442695
        %v1587 = vpow.pop %v1586
        %v1588 = vmul.f32 %v1585, 1.442695
        %v1589 = vpow.pop %v1588
        %v1590 = vsel %vm537, %v1587, 0.0
        %1591 = vadd.xlane.f32.xlu0 %v1590
        %v1592 = vpop.xlane.xlu0 %1591
        %v1593 = vsel %vm537, %v1589, 0.0
        %1594 = vadd.xlane.f32.xlu0 %v1593
        %v1595 = vpop.xlane.xlu0 %1594
        %v1596 = vrcp.pop %v1592
        %v1597 = vrcp.pop %v1595
        %v1598 = vmul.f32 %v1587, %v1596
        %v1599 = vmul.f32 %v1589, %v1597
        %v1601 = vsel %vm537, %v1598, 0
        %v1604 = vsel %vm537, %v1599, 0
        %1606 = vmatprep.subr.mxu0 0.0
        %1607 = vmatpush1.msra.mxu0 0.0
        %1608 = vmatprep.subr.mxu0 0.0
        %1609 = vmatpush1.msra.mxu0 0.0
        %1610 = vmatprep.subr.mxu0 0.0
        %1611 = vmatpush1.msra.mxu0 0.0
        %1612 = vmatprep.subr.mxu0 0.0
        %1613 = vmatpush1.msra.mxu0 0.0
        %1614 = vmatprep.subr.mxu0 0.0
        %1615 = vmatpush1.msra.mxu0 0.0
        %1616 = vmatprep.subr.mxu0 0.0
        %1617 = vmatpush1.msra.mxu0 0.0
        %1618 = vmatprep.subr.mxu0 0.0
        %1619 = vmatpush1.msra.mxu0 0.0
        %1620 = vmatprep.subr.mxu0 0.0
        %1621 = vmatpush1.msra.mxu0 0.0
        %1622 = vmatprep.subr.mxu0 0.0
        %1623 = vmatpush1.msra.mxu0 0.0
        %1624 = vmatprep.subr.mxu0 0.0
        %1625 = vmatpush1.msra.mxu0 0.0
        %1626 = vmatprep.subr.mxu0 0.0
        %1627 = vmatpush1.msra.mxu0 0.0
        %1628 = vmatprep.subr.mxu0 0.0
        %1629 = vmatpush1.msra.mxu0 0.0
        %1630 = vmatprep.subr.mxu0 0.0
        %1631 = vmatpush1.msra.mxu0 0.0
        %1632 = vmatprep.subr.mxu0 0.0
        %1633 = vmatpush1.msra.mxu0 0.0
        %1634 = vmatprep.subr.mxu0 0.0
        %1635 = vmatpush1.msra.mxu0 %v1403
        %1636 = vmatprep.subr.mxu0 0.0
        %1637 = vmatpush1.msra.mxu0 %v1401
        %1638 = vmatprep.subr.mxu0 0.0
        %1639 = vmatpush2.msra.mxu0 0.0
        %1640 = vmatprep.subr.mxu0 0.0
        %1641 = vmatpush2.msra.mxu0 0.0
        %1642 = vmatprep.subr.mxu0 0.0
        %1643 = vmatpush2.msra.mxu0 0.0
        %1644 = vmatprep.subr.mxu0 0.0
        %1645 = vmatpush2.msra.mxu0 0.0
        %1646 = vmatprep.subr.mxu0 0.0
        %1647 = vmatpush2.msra.mxu0 0.0
        %1648 = vmatprep.subr.mxu0 0.0
        %1649 = vmatpush2.msra.mxu0 0.0
        %1650 = vmatprep.subr.mxu0 0.0
        %1651 = vmatpush2.msra.mxu0 0.0
        %1652 = vmatprep.subr.mxu0 0.0
        %1653 = vmatpush2.msra.mxu0 0.0
        %1654 = vmatprep.subr.mxu0 0.0
        %1655 = vmatpush2.msra.mxu0 0.0
        %1656 = vmatprep.subr.mxu0 0.0
        %1657 = vmatpush2.msra.mxu0 0.0
        %1658 = vmatprep.subr.mxu0 0.0
        %1659 = vmatpush2.msra.mxu0 0.0
        %1660 = vmatprep.subr.mxu0 0.0
        %1661 = vmatpush2.msra.mxu0 0.0
        %1662 = vmatprep.subr.mxu0 0.0
        %1663 = vmatpush2.msra.mxu0 0.0
        %1664 = vmatprep.subr.mxu0 0.0
        %1665 = vmatpush2.msra.mxu0 0.0
        %1666 = vmatprep.subr.mxu0 0.0
        %1667 = vmatpush2.msra.mxu0 0.0
        %1668 = vmatprep.subr.mxu0 0.0
        %1669 = vmatpush2.msra.mxu0 0.0
        %1670 = vmatprep.mubr.f32.mxu0 0.0
        %1671 = vmatmul.mubr.f32.gmra.mxu0 %v1601
        %v1672 = vpop.f32.mrf.mxu0
        %v1673 = vadd.f32 0.0, %v1672
        %v1674 = vpop.f32.mrf.mxu0
        %1675 = vmatprep.mubr.f32.mxu0 0.0
        %1676 = vmatmul.mubr.f32.gmra.mxu0 %v1604
        %v1677 = vpop.f32.mrf.mxu0
        %v1678 = vadd.f32 0.0, %v1677
        %v1679 = vpop.f32.mrf.mxu0
        %1680 = vdwg.mxu0
        %v1681 = vmul.f32 %v835, %v1673
        %v1682 = vmul.f32 %v835, %v1678
        %v1683 = vsub.f32 %v1479, %v1681
        %v1684 = vsub.f32 %v1484, %v1682
        %v1685 = vmul.f32 %v1683, %v1683
        %v1686 = vmul.f32 %v1684, %v1684
        %v1687 = vsel %vm537, %v1685, 0.0
        %1688 = vadd.xlane.f32.xlu0 %v1687
        %v1689 = vpop.xlane.xlu0 %1688
        %v1690 = vsel %vm537, %v1686, 0.0
        %1691 = vadd.xlane.f32.xlu0 %v1690
        %v1692 = vpop.xlane.xlu0 %1691
        %v1693 = vmul.f32 %v1689, %v848
        %v1694 = vmul.f32 %v1692, %v848
        %v1695 = vadd.f32 %v1693, 1e-05
        %v1696 = vadd.f32 %v1694, 1e-05
        %v1697 = vrsqrt.pop %v1695
        %v1698 = vrsqrt.pop %v1696
        %v1699 = vmul.f32 %v1683, %v1697
        %v1700 = vmul.f32 %v1684, %v1698
        %v1701 = vmul.f32 %v1699, %v861
        %v1702 = vmul.f32 %v1700, %v861
        %v1703 = vmul.f32 %v1701, 0.64449096
        %v1704 = vmul.f32 %v1702, 0.64449096
        %1705 = vrot.lane.b32.xlu0 %v443, 80
        %v1706 = vpop.permute.xlu0 %1705
        %1707 = vrot.lane.b32.xlu0 %v444, 80
        %v1708 = vpop.permute.xlu0 %1707
        %1709 = vrot.lane.b32.xlu0 %v432, 16
        %v1710 = vpop.permute.xlu0 %1709
        %1711 = vrot.lane.b32.xlu0 %v438, 16
        %v1712 = vpop.permute.xlu0 %1711
        %v1713 = vsel %vm451, %v1706, 0
        %v1715 = vsel %vm451, %v1708, 0
        %v1717 = vsel %vm451, %v1710, 0
        %v1719 = vsel %vm451, %v1712, 0
        %1721 = vmatprep.subr.mxu0 0.0
        %1722 = vmatpush1.xpose.msra.mxu0 0.0
        %1723 = vmatprep.subr.mxu0 0.0
        %1724 = vmatpush1.xpose.msra.mxu0 0.0
        %1725 = vmatprep.subr.mxu0 0.0
        %1726 = vmatpush1.xpose.msra.mxu0 0.0
        %1727 = vmatprep.subr.mxu0 0.0
        %1728 = vmatpush1.xpose.msra.mxu0 0.0
        %1729 = vmatprep.subr.mxu0 0.0
        %1730 = vmatpush1.xpose.msra.mxu0 0.0
        %1731 = vmatprep.subr.mxu0 0.0
        %1732 = vmatpush1.xpose.msra.mxu0 0.0
        %1733 = vmatprep.subr.mxu0 0.0
        %1734 = vmatpush1.xpose.msra.mxu0 0.0
        %1735 = vmatprep.subr.mxu0 0.0
        %1736 = vmatpush1.xpose.msra.mxu0 0.0
        %1737 = vmatprep.subr.mxu0 0.0
        %1738 = vmatpush1.xpose.msra.mxu0 0.0
        %1739 = vmatprep.subr.mxu0 0.0
        %1740 = vmatpush1.xpose.msra.mxu0 0.0
        %1741 = vmatprep.subr.mxu0 0.0
        %1742 = vmatpush1.xpose.msra.mxu0 0.0
        %1743 = vmatprep.subr.mxu0 0.0
        %1744 = vmatpush1.xpose.msra.mxu0 0.0
        %1745 = vmatprep.subr.mxu0 0.0
        %1746 = vmatpush1.xpose.msra.mxu0 0.0
        %1747 = vmatprep.subr.mxu0 0.0
        %1748 = vmatpush1.xpose.msra.mxu0 0.0
        %1749 = vmatprep.subr.mxu0 0.0
        %1750 = vmatpush1.xpose.msra.mxu0 %v1719
        %1751 = vmatprep.subr.mxu0 0.0
        %1752 = vmatpush1.xpose.msra.mxu0 %v1717
        %1753 = vmatprep.subr.mxu0 0.0
        %1754 = vmatpush2.xpose.msra.mxu0 0.0
        %1755 = vmatprep.subr.mxu0 0.0
        %1756 = vmatpush2.xpose.msra.mxu0 0.0
        %1757 = vmatprep.subr.mxu0 0.0
        %1758 = vmatpush2.xpose.msra.mxu0 0.0
        %1759 = vmatprep.subr.mxu0 0.0
        %1760 = vmatpush2.xpose.msra.mxu0 0.0
        %1761 = vmatprep.subr.mxu0 0.0
        %1762 = vmatpush2.xpose.msra.mxu0 0.0
        %1763 = vmatprep.subr.mxu0 0.0
        %1764 = vmatpush2.xpose.msra.mxu0 0.0
        %1765 = vmatprep.subr.mxu0 0.0
        %1766 = vmatpush2.xpose.msra.mxu0 0.0
        %1767 = vmatprep.subr.mxu0 0.0
        %1768 = vmatpush2.xpose.msra.mxu0 0.0
        %1769 = vmatprep.subr.mxu0 0.0
        %1770 = vmatpush2.xpose.msra.mxu0 0.0
        %1771 = vmatprep.subr.mxu0 0.0
        %1772 = vmatpush2.xpose.msra.mxu0 0.0
        %1773 = vmatprep.subr.mxu0 0.0
        %1774 = vmatpush2.xpose.msra.mxu0 0.0
        %1775 = vmatprep.subr.mxu0 0.0
        %1776 = vmatpush2.xpose.msra.mxu0 0.0
        %1777 = vmatprep.subr.mxu0 0.0
        %1778 = vmatpush2.xpose.msra.mxu0 0.0
        %1779 = vmatprep.subr.mxu0 0.0
        %1780 = vmatpush2.xpose.msra.mxu0 0.0
        %1781 = vmatprep.subr.mxu0 0.0
        %1782 = vmatpush2.xpose.msra.mxu0 0.0
        %1783 = vmatprep.subr.mxu0 0.0
        %1784 = vmatpush2.xpose.msra.mxu0 0.0
        %1785 = vmatprep.mubr.f32.mxu0 0.0
        %1786 = vmatmul.mubr.f32.gmra.mxu0 %v1713
        %v1787 = vpop.f32.mrf.mxu0
        %v1788 = vadd.f32 0.0, %v1787
        %v1789 = vpop.f32.mrf.mxu0
        %1790 = vmatprep.mubr.f32.mxu0 0.0
        %1791 = vmatmul.mubr.f32.gmra.mxu0 %v1715
        %v1792 = vpop.f32.mrf.mxu0
        %v1793 = vadd.f32 0.0, %v1792
        %v1794 = vpop.f32.mrf.mxu0
        %1795 = vdwg.mxu0
        %v1796 = vsel %vm537, %v1788, -inf
        %1797 = vmax.xlane.f32.xlu0 %v1796
        %v1798 = vpop.xlane.xlu0 %1797
        %v1799 = vsel %vm537, %v1793, -inf
        %1800 = vmax.xlane.f32.xlu0 %v1799
        %v1801 = vpop.xlane.xlu0 %1800
        %v1802 = vsub.f32 %v1788, %v1798
        %v1803 = vsub.f32 %v1793, %v1801
        %v1804 = vmul.f32 %v1802, 1.442695
        %v1805 = vpow.pop %v1804
        %v1806 = vmul.f32 %v1803, 1.442695
        %v1807 = vpow.pop %v1806
        %v1808 = vsel %vm537, %v1805, 0.0
        %1809 = vadd.xlane.f32.xlu0 %v1808
        %v1810 = vpop.xlane.xlu0 %1809
        %v1811 = vsel %vm537, %v1807, 0.0
        %1812 = vadd.xlane.f32.xlu0 %v1811
        %v1813 = vpop.xlane.xlu0 %1812
        %v1814 = vrcp.pop %v1810
        %v1815 = vrcp.pop %v1813
        %v1816 = vmul.f32 %v1805, %v1814
        %v1817 = vmul.f32 %v1807, %v1815
        %1818 = vrot.lane.b32.xlu0 %v434, 80
        %v1819 = vpop.permute.xlu0 %1818
        %1820 = vrot.lane.b32.xlu0 %v440, 80
        %v1821 = vpop.permute.xlu0 %1820
        %v1825 = vsel %vm537, %v1816, 0
        %v1828 = vsel %vm537, %v1817, 0
        %1830 = vmatprep.subr.mxu0 0.0
        %1831 = vmatpush1.msra.mxu0 0.0
        %1832 = vmatprep.subr.mxu0 0.0
        %1833 = vmatpush1.msra.mxu0 0.0
        %1834 = vmatprep.subr.mxu0 0.0
        %1835 = vmatpush1.msra.mxu0 0.0
        %1836 = vmatprep.subr.mxu0 0.0
        %1837 = vmatpush1.msra.mxu0 0.0
        %1838 = vmatprep.subr.mxu0 0.0
        %1839 = vmatpush1.msra.mxu0 0.0
        %1840 = vmatprep.subr.mxu0 0.0
        %1841 = vmatpush1.msra.mxu0 0.0
        %1842 = vmatprep.subr.mxu0 0.0
        %1843 = vmatpush1.msra.mxu0 0.0
        %1844 = vmatprep.subr.mxu0 0.0
        %1845 = vmatpush1.msra.mxu0 0.0
        %1846 = vmatprep.subr.mxu0 0.0
        %1847 = vmatpush1.msra.mxu0 0.0
        %1848 = vmatprep.subr.mxu0 0.0
        %1849 = vmatpush1.msra.mxu0 0.0
        %1850 = vmatprep.subr.mxu0 0.0
        %1851 = vmatpush1.msra.mxu0 0.0
        %1852 = vmatprep.subr.mxu0 0.0
        %1853 = vmatpush1.msra.mxu0 0.0
        %1854 = vmatprep.subr.mxu0 0.0
        %1855 = vmatpush1.msra.mxu0 0.0
        %1856 = vmatprep.subr.mxu0 0.0
        %1857 = vmatpush1.msra.mxu0 0.0
        %1858 = vmatprep.subr.mxu0 0.0
        %1859 = vmatpush1.msra.mxu0 %v1821
        %1860 = vmatprep.subr.mxu0 0.0
        %1861 = vmatpush1.msra.mxu0 %v1819
        %1862 = vmatprep.subr.mxu0 0.0
        %1863 = vmatpush2.msra.mxu0 0.0
        %1864 = vmatprep.subr.mxu0 0.0
        %1865 = vmatpush2.msra.mxu0 0.0
        %1866 = vmatprep.subr.mxu0 0.0
        %1867 = vmatpush2.msra.mxu0 0.0
        %1868 = vmatprep.subr.mxu0 0.0
        %1869 = vmatpush2.msra.mxu0 0.0
        %1870 = vmatprep.subr.mxu0 0.0
        %1871 = vmatpush2.msra.mxu0 0.0
        %1872 = vmatprep.subr.mxu0 0.0
        %1873 = vmatpush2.msra.mxu0 0.0
        %1874 = vmatprep.subr.mxu0 0.0
        %1875 = vmatpush2.msra.mxu0 0.0
        %1876 = vmatprep.subr.mxu0 0.0
        %1877 = vmatpush2.msra.mxu0 0.0
        %1878 = vmatprep.subr.mxu0 0.0
        %1879 = vmatpush2.msra.mxu0 0.0
        %1880 = vmatprep.subr.mxu0 0.0
        %1881 = vmatpush2.msra.mxu0 0.0
        %1882 = vmatprep.subr.mxu0 0.0
        %1883 = vmatpush2.msra.mxu0 0.0
        %1884 = vmatprep.subr.mxu0 0.0
        %1885 = vmatpush2.msra.mxu0 0.0
        %1886 = vmatprep.subr.mxu0 0.0
        %1887 = vmatpush2.msra.mxu0 0.0
        %1888 = vmatprep.subr.mxu0 0.0
        %1889 = vmatpush2.msra.mxu0 0.0
        %1890 = vmatprep.subr.mxu0 0.0
        %1891 = vmatpush2.msra.mxu0 0.0
        %1892 = vmatprep.subr.mxu0 0.0
        %1893 = vmatpush2.msra.mxu0 0.0
        %1894 = vmatprep.mubr.f32.mxu0 0.0
        %1895 = vmatmul.mubr.f32.gmra.mxu0 %v1825
        %v1896 = vpop.f32.mrf.mxu0
        %v1897 = vadd.f32 0.0, %v1896
        %v1898 = vpop.f32.mrf.mxu0
        %1899 = vmatprep.mubr.f32.mxu0 0.0
        %1900 = vmatmul.mubr.f32.gmra.mxu0 %v1828
        %v1901 = vpop.f32.mrf.mxu0
        %v1902 = vadd.f32 0.0, %v1901
        %v1903 = vpop.f32.mrf.mxu0
        %1904 = vdwg.mxu0
        %1905 = vrot.lane.b32.xlu0 %v443, 72
        %v1906 = vpop.permute.xlu0 %1905
        %1907 = vrot.lane.b32.xlu0 %v444, 72
        %v1908 = vpop.permute.xlu0 %1907
        %1909 = vrot.lane.b32.xlu0 %v432, 8
        %v1910 = vpop.permute.xlu0 %1909
        %1911 = vrot.lane.b32.xlu0 %v438, 8
        %v1912 = vpop.permute.xlu0 %1911
        %v1913 = vsel %vm451, %v1906, 0
        %v1915 = vsel %vm451, %v1908, 0
        %v1917 = vsel %vm451, %v1910, 0
        %v1919 = vsel %vm451, %v1912, 0
        %1921 = vmatprep.subr.mxu0 0.0
        %1922 = vmatpush1.xpose.msra.mxu0 0.0
        %1923 = vmatprep.subr.mxu0 0.0
        %1924 = vmatpush1.xpose.msra.mxu0 0.0
        %1925 = vmatprep.subr.mxu0 0.0
        %1926 = vmatpush1.xpose.msra.mxu0 0.0
        %1927 = vmatprep.subr.mxu0 0.0
        %1928 = vmatpush1.xpose.msra.mxu0 0.0
        %1929 = vmatprep.subr.mxu0 0.0
        %1930 = vmatpush1.xpose.msra.mxu0 0.0
        %1931 = vmatprep.subr.mxu0 0.0
        %1932 = vmatpush1.xpose.msra.mxu0 0.0
        %1933 = vmatprep.subr.mxu0 0.0
        %1934 = vmatpush1.xpose.msra.mxu0 0.0
        %1935 = vmatprep.subr.mxu0 0.0
        %1936 = vmatpush1.xpose.msra.mxu0 0.0
        %1937 = vmatprep.subr.mxu0 0.0
        %1938 = vmatpush1.xpose.msra.mxu0 0.0
        %1939 = vmatprep.subr.mxu0 0.0
        %1940 = vmatpush1.xpose.msra.mxu0 0.0
        %1941 = vmatprep.subr.mxu0 0.0
        %1942 = vmatpush1.xpose.msra.mxu0 0.0
        %1943 = vmatprep.subr.mxu0 0.0
        %1944 = vmatpush1.xpose.msra.mxu0 0.0
        %1945 = vmatprep.subr.mxu0 0.0
        %1946 = vmatpush1.xpose.msra.mxu0 0.0
        %1947 = vmatprep.subr.mxu0 0.0
        %1948 = vmatpush1.xpose.msra.mxu0 0.0
        %1949 = vmatprep.subr.mxu0 0.0
        %1950 = vmatpush1.xpose.msra.mxu0 %v1919
        %1951 = vmatprep.subr.mxu0 0.0
        %1952 = vmatpush1.xpose.msra.mxu0 %v1917
        %1953 = vmatprep.subr.mxu0 0.0
        %1954 = vmatpush2.xpose.msra.mxu0 0.0
        %1955 = vmatprep.subr.mxu0 0.0
        %1956 = vmatpush2.xpose.msra.mxu0 0.0
        %1957 = vmatprep.subr.mxu0 0.0
        %1958 = vmatpush2.xpose.msra.mxu0 0.0
        %1959 = vmatprep.subr.mxu0 0.0
        %1960 = vmatpush2.xpose.msra.mxu0 0.0
        %1961 = vmatprep.subr.mxu0 0.0
        %1962 = vmatpush2.xpose.msra.mxu0 0.0
        %1963 = vmatprep.subr.mxu0 0.0
        %1964 = vmatpush2.xpose.msra.mxu0 0.0
        %1965 = vmatprep.subr.mxu0 0.0
        %1966 = vmatpush2.xpose.msra.mxu0 0.0
        %1967 = vmatprep.subr.mxu0 0.0
        %1968 = vmatpush2.xpose.msra.mxu0 0.0
        %1969 = vmatprep.subr.mxu0 0.0
        %1970 = vmatpush2.xpose.msra.mxu0 0.0
        %1971 = vmatprep.subr.mxu0 0.0
        %1972 = vmatpush2.xpose.msra.mxu0 0.0
        %1973 = vmatprep.subr.mxu0 0.0
        %1974 = vmatpush2.xpose.msra.mxu0 0.0
        %1975 = vmatprep.subr.mxu0 0.0
        %1976 = vmatpush2.xpose.msra.mxu0 0.0
        %1977 = vmatprep.subr.mxu0 0.0
        %1978 = vmatpush2.xpose.msra.mxu0 0.0
        %1979 = vmatprep.subr.mxu0 0.0
        %1980 = vmatpush2.xpose.msra.mxu0 0.0
        %1981 = vmatprep.subr.mxu0 0.0
        %1982 = vmatpush2.xpose.msra.mxu0 0.0
        %1983 = vmatprep.subr.mxu0 0.0
        %1984 = vmatpush2.xpose.msra.mxu0 0.0
        %1985 = vmatprep.mubr.f32.mxu0 0.0
        %1986 = vmatmul.mubr.f32.gmra.mxu0 %v1913
        %v1987 = vpop.f32.mrf.mxu0
        %v1988 = vadd.f32 0.0, %v1987
        %v1989 = vpop.f32.mrf.mxu0
        %1990 = vmatprep.mubr.f32.mxu0 0.0
        %1991 = vmatmul.mubr.f32.gmra.mxu0 %v1915
        %v1992 = vpop.f32.mrf.mxu0
        %v1993 = vadd.f32 0.0, %v1992
        %v1994 = vpop.f32.mrf.mxu0
        %1995 = vdwg.mxu0
        %v1996 = vsel %vm537, %v1988, -inf
        %1997 = vmax.xlane.f32.xlu0 %v1996
        %v1998 = vpop.xlane.xlu0 %1997
        %v1999 = vsel %vm537, %v1993, -inf
        %2000 = vmax.xlane.f32.xlu0 %v1999
        %v2001 = vpop.xlane.xlu0 %2000
        %v2002 = vsub.f32 %v1988, %v1998
        %v2003 = vsub.f32 %v1993, %v2001
        %v2004 = vmul.f32 %v2002, 1.442695
        %v2005 = vpow.pop %v2004
        %v2006 = vmul.f32 %v2003, 1.442695
        %v2007 = vpow.pop %v2006
        %v2008 = vsel %vm537, %v2005, 0.0
        %2009 = vadd.xlane.f32.xlu0 %v2008
        %v2010 = vpop.xlane.xlu0 %2009
        %v2011 = vsel %vm537, %v2007, 0.0
        %2012 = vadd.xlane.f32.xlu0 %v2011
        %v2013 = vpop.xlane.xlu0 %2012
        %v2014 = vrcp.pop %v2010
        %v2015 = vrcp.pop %v2013
        %v2016 = vmul.f32 %v2005, %v2014
        %v2017 = vmul.f32 %v2007, %v2015
        %v2019 = vsel %vm537, %v2016, 0
        %v2022 = vsel %vm537, %v2017, 0
        %2024 = vmatprep.subr.mxu0 0.0
        %2025 = vmatpush1.msra.mxu0 0.0
        %2026 = vmatprep.subr.mxu0 0.0
        %2027 = vmatpush1.msra.mxu0 0.0
        %2028 = vmatprep.subr.mxu0 0.0
        %2029 = vmatpush1.msra.mxu0 0.0
        %2030 = vmatprep.subr.mxu0 0.0
        %2031 = vmatpush1.msra.mxu0 0.0
        %2032 = vmatprep.subr.mxu0 0.0
        %2033 = vmatpush1.msra.mxu0 0.0
        %2034 = vmatprep.subr.mxu0 0.0
        %2035 = vmatpush1.msra.mxu0 0.0
        %2036 = vmatprep.subr.mxu0 0.0
        %2037 = vmatpush1.msra.mxu0 0.0
        %2038 = vmatprep.subr.mxu0 0.0
        %2039 = vmatpush1.msra.mxu0 0.0
        %2040 = vmatprep.subr.mxu0 0.0
        %2041 = vmatpush1.msra.mxu0 0.0
        %2042 = vmatprep.subr.mxu0 0.0
        %2043 = vmatpush1.msra.mxu0 0.0
        %2044 = vmatprep.subr.mxu0 0.0
        %2045 = vmatpush1.msra.mxu0 0.0
        %2046 = vmatprep.subr.mxu0 0.0
        %2047 = vmatpush1.msra.mxu0 0.0
        %2048 = vmatprep.subr.mxu0 0.0
        %2049 = vmatpush1.msra.mxu0 0.0
        %2050 = vmatprep.subr.mxu0 0.0
        %2051 = vmatpush1.msra.mxu0 0.0
        %2052 = vmatprep.subr.mxu0 0.0
        %2053 = vmatpush1.msra.mxu0 %v1821
        %2054 = vmatprep.subr.mxu0 0.0
        %2055 = vmatpush1.msra.mxu0 %v1819
        %2056 = vmatprep.subr.mxu0 0.0
        %2057 = vmatpush2.msra.mxu0 0.0
        %2058 = vmatprep.subr.mxu0 0.0
        %2059 = vmatpush2.msra.mxu0 0.0
        %2060 = vmatprep.subr.mxu0 0.0
        %2061 = vmatpush2.msra.mxu0 0.0
        %2062 = vmatprep.subr.mxu0 0.0
        %2063 = vmatpush2.msra.mxu0 0.0
        %2064 = vmatprep.subr.mxu0 0.0
        %2065 = vmatpush2.msra.mxu0 0.0
        %2066 = vmatprep.subr.mxu0 0.0
        %2067 = vmatpush2.msra.mxu0 0.0
        %2068 = vmatprep.subr.mxu0 0.0
        %2069 = vmatpush2.msra.mxu0 0.0
        %2070 = vmatprep.subr.mxu0 0.0
        %2071 = vmatpush2.msra.mxu0 0.0
        %2072 = vmatprep.subr.mxu0 0.0
        %2073 = vmatpush2.msra.mxu0 0.0
        %2074 = vmatprep.subr.mxu0 0.0
        %2075 = vmatpush2.msra.mxu0 0.0
        %2076 = vmatprep.subr.mxu0 0.0
        %2077 = vmatpush2.msra.mxu0 0.0
        %2078 = vmatprep.subr.mxu0 0.0
        %2079 = vmatpush2.msra.mxu0 0.0
        %2080 = vmatprep.subr.mxu0 0.0
        %2081 = vmatpush2.msra.mxu0 0.0
        %2082 = vmatprep.subr.mxu0 0.0
        %2083 = vmatpush2.msra.mxu0 0.0
        %2084 = vmatprep.subr.mxu0 0.0
        %2085 = vmatpush2.msra.mxu0 0.0
        %2086 = vmatprep.subr.mxu0 0.0
        %2087 = vmatpush2.msra.mxu0 0.0
        %2088 = vmatprep.mubr.f32.mxu0 0.0
        %2089 = vmatmul.mubr.f32.gmra.mxu0 %v2019
        %v2090 = vpop.f32.mrf.mxu0
        %v2091 = vadd.f32 0.0, %v2090
        %v2092 = vpop.f32.mrf.mxu0
        %2093 = vmatprep.mubr.f32.mxu0 0.0
        %2094 = vmatmul.mubr.f32.gmra.mxu0 %v2022
        %v2095 = vpop.f32.mrf.mxu0
        %v2096 = vadd.f32 0.0, %v2095
        %v2097 = vpop.f32.mrf.mxu0
        %2098 = vdwg.mxu0
        %v2099 = vmul.f32 %v835, %v2091
        %v2100 = vmul.f32 %v835, %v2096
        %v2101 = vsub.f32 %v1897, %v2099
        %v2102 = vsub.f32 %v1902, %v2100
        %v2103 = vmul.f32 %v2101, %v2101
        %v2104 = vmul.f32 %v2102, %v2102
        %v2105 = vsel %vm537, %v2103, 0.0
        %2106 = vadd.xlane.f32.xlu0 %v2105
        %v2107 = vpop.xlane.xlu0 %2106
        %v2108 = vsel %vm537, %v2104, 0.0
        %2109 = vadd.xlane.f32.xlu0 %v2108
        %v2110 = vpop.xlane.xlu0 %2109
        %v2111 = vmul.f32 %v2107, %v848
        %v2112 = vmul.f32 %v2110, %v848
        %v2113 = vadd.f32 %v2111, 1e-05
        %v2114 = vadd.f32 %v2112, 1e-05
        %v2115 = vrsqrt.pop %v2113
        %v2116 = vrsqrt.pop %v2114
        %v2117 = vmul.f32 %v2101, %v2115
        %v2118 = vmul.f32 %v2102, %v2116
        %v2119 = vmul.f32 %v2117, %v861
        %v2120 = vmul.f32 %v2118, %v861
        %v2121 = vmul.f32 %v2119, 0.64449096
        %v2122 = vmul.f32 %v2120, 0.64449096
        %2125 = vrot.lane.b32.xlu0 %v1285, 16
        %v2126 = vpop.permute.xlu0 %2125
        %2127 = vrot.lane.b32.xlu0 %v1286, 16
        %v2128 = vpop.permute.xlu0 %2127
        %2133 = vrot.lane.b32.xlu0 %v1703, 32
        %v2134 = vpop.permute.xlu0 %2133
        %2135 = vrot.lane.b32.xlu0 %v1704, 32
        %v2136 = vpop.permute.xlu0 %2135
        %2141 = vrot.lane.b32.xlu0 %v2121, 48
        %v2142 = vpop.permute.xlu0 %2141
        %2143 = vrot.lane.b32.xlu0 %v2122, 48
        %v2144 = vpop.permute.xlu0 %2143
        %v2147 = vsel %vm537, %v865, %v2126
        %v2148 = vsel %vm537, %v866, %v2128
        %vm2149 = vcmask 261120
        %v2150 = vsel %vm2149, %v2147, %v2134
        %v2151 = vsel %vm2149, %v2148, %v2136
        %vm2152 = vcmask 392192
        %v2153 = vsel %vm2152, %v2150, %v2142
        %v2154 = vsel %vm2152, %v2151, %v2144
        %v2155 = vld [vmem:[#allocation8] sm:$0xff]
        %v2156 = vld [vmem:[#allocation8 + $0x8] sm:$0xff]
        %v2157 = vld [vmem:[#allocation8 + $0x10] sm:$0xff]
        %v2158 = vld [vmem:[#allocation8 + $0x18] sm:$0xff]
        %v2159 = vld [vmem:[#allocation8 + $0x20] sm:$0xff]
        %v2160 = vld [vmem:[#allocation8 + $0x28] sm:$0xff]
        %v2161 = vld [vmem:[#allocation8 + $0x30] sm:$0xff]
        %v2162 = vld [vmem:[#allocation8 + $0x38] sm:$0xff]
        %v2163 = vld [vmem:[%s5] sm:$0x1]
        %v2165 = vlaneseq
        %v2166 = vshrl.u32 %v2165, 7
        %v2167 = vsub.s32 0, %v2166
        %v2168 = vrot.slane %v2163, %v2167
        %v2171 = vsel %vm358, %v2153, 0
        %v2174 = vsel %vm358, %v2154, 0
        %2176 = vmatprep.subr.mxu0 0.0
        %2177 = vmatpush1.msra.mxu0 0.0
        %2178 = vmatprep.subr.mxu0 0.0
        %2179 = vmatpush1.msra.mxu0 0.0
        %2180 = vmatprep.subr.mxu0 0.0
        %2181 = vmatpush1.msra.mxu0 0.0
        %2182 = vmatprep.subr.mxu0 0.0
        %2183 = vmatpush1.msra.mxu0 0.0
        %2184 = vmatprep.subr.mxu0 0.0
        %2185 = vmatpush1.msra.mxu0 0.0
        %2186 = vmatprep.subr.mxu0 0.0
        %2187 = vmatpush1.msra.mxu0 0.0
        %2188 = vmatprep.subr.mxu0 0.0
        %2189 = vmatpush1.msra.mxu0 0.0
        %2190 = vmatprep.subr.mxu0 0.0
        %2191 = vmatpush1.msra.mxu0 0.0
        %2192 = vmatprep.subr.mxu0 0.0
        %2193 = vmatpush1.msra.mxu0 %v2162
        %2194 = vmatprep.subr.mxu0 0.0
        %2195 = vmatpush1.msra.mxu0 %v2161
        %2196 = vmatprep.subr.mxu0 0.0
        %2197 = vmatpush1.msra.mxu0 %v2160
        %2198 = vmatprep.subr.mxu0 0.0
        %2199 = vmatpush1.msra.mxu0 %v2159
        %2200 = vmatprep.subr.mxu0 0.0
        %2201 = vmatpush1.msra.mxu0 %v2158
        %2202 = vmatprep.subr.mxu0 0.0
        %2203 = vmatpush1.msra.mxu0 %v2157
        %2204 = vmatprep.subr.mxu0 0.0
        %2205 = vmatpush1.msra.mxu0 %v2156
        %2206 = vmatprep.subr.mxu0 0.0
        %2207 = vmatpush1.msra.mxu0 %v2155
        %2208 = vmatprep.subr.mxu0 0.0
        %2209 = vmatpush2.msra.mxu0 0.0
        %2210 = vmatprep.subr.mxu0 0.0
        %2211 = vmatpush2.msra.mxu0 0.0
        %2212 = vmatprep.subr.mxu0 0.0
        %2213 = vmatpush2.msra.mxu0 0.0
        %2214 = vmatprep.subr.mxu0 0.0
        %2215 = vmatpush2.msra.mxu0 0.0
        %2216 = vmatprep.subr.mxu0 0.0
        %2217 = vmatpush2.msra.mxu0 0.0
        %2218 = vmatprep.subr.mxu0 0.0
        %2219 = vmatpush2.msra.mxu0 0.0
        %2220 = vmatprep.subr.mxu0 0.0
        %2221 = vmatpush2.msra.mxu0 0.0
        %2222 = vmatprep.subr.mxu0 0.0
        %2223 = vmatpush2.msra.mxu0 0.0
        %2224 = vmatprep.subr.mxu0 0.0
        %2225 = vmatpush2.msra.mxu0 0.0
        %2226 = vmatprep.subr.mxu0 0.0
        %2227 = vmatpush2.msra.mxu0 0.0
        %2228 = vmatprep.subr.mxu0 0.0
        %2229 = vmatpush2.msra.mxu0 0.0
        %2230 = vmatprep.subr.mxu0 0.0
        %2231 = vmatpush2.msra.mxu0 0.0
        %2232 = vmatprep.subr.mxu0 0.0
        %2233 = vmatpush2.msra.mxu0 0.0
        %2234 = vmatprep.subr.mxu0 0.0
        %2235 = vmatpush2.msra.mxu0 0.0
        %2236 = vmatprep.subr.mxu0 0.0
        %2237 = vmatpush2.msra.mxu0 0.0
        %2238 = vmatprep.subr.mxu0 0.0
        %2239 = vmatpush2.msra.mxu0 0.0
        %2240 = vmatprep.mubr.f32.mxu0 0.0
        %2241 = vmatmul.mubr.f32.gmra.mxu0 %v2171
        %v2242 = vpop.f32.mrf.mxu0
        %v2243 = vadd.f32 %v2168, %v2242
        %v2244 = vpop.f32.mrf.mxu0
        %2245 = vmatprep.mubr.f32.mxu0 0.0
        %2246 = vmatmul.mubr.f32.gmra.mxu0 %v2174
        %v2247 = vpop.f32.mrf.mxu0
        %v2248 = vadd.f32 %v2168, %v2247
        %v2249 = vpop.f32.mrf.mxu0
        %2250 = vdwg.mxu0
        %2251 = vst.msk [vmem:[%s326] sm:$0xff] %vm358, %v2243
        %2252 = vst.msk [vmem:[%s326 + $0x8] sm:$0xff] %vm358, %v2248
        %s2253 = sand.u32 %s186, 1
        %s2254 = scalar_lea.sflag [#allocation5], %s2253
        %s2255 = sand.u32 %s186, 1
        %s2256 = smul.addr %s2255, 16
        %s2257 = scalar_lea.vmem [#allocation9], %s2256
        // Predicated region
        $region61: #{tpu_custom_call.1} parent=47 // pred_check
          %p2258 = pneg %p196
        $region62: #{tpu_custom_call.1} parent=47 // pred_check_branch
          %2260 = sbr.rel (%p2258) target = $region64
        $region63: #{tpu_custom_call.1} parent=47 // pred_region
          %s2262 = ssub.s32 256, 256
          %2263 = vsyncadd %s2254, %s2262
          %s2264 = smul.addr %s26, 2
          %s2265 = smul.addr %s2264, 128
          %s2266 = scalar_lea.hbm %s7, %s2265
          %s2267 = sshll.u32 %s2257, 4
          %s2268 = int_to_ptr.vmem [resolvable:$true] %s2267
          %2273 = dma.vmem_to_hbm [thread:$0]  %s2268, 256, %s2266, %s2254, 128, 128, 8
        $region64: #{tpu_custom_call.1} parent=47 // pred_fallthru
          _
      $region48: #{tpu_custom_call.1} parent=5 // pred_fallthru
        _
      %p2274 = scmp.le.s32.totalorder 2, %s21
      // Predicated region
      $region65: #{tpu_custom_call.1} parent=5 // pred_check
        %p2275 = pneg %p2274
      $region66: #{tpu_custom_call.1} parent=5 // pred_check_branch
        %2277 = sbr.rel (%p2275) target = $region68
      $region67: #{tpu_custom_call.1} parent=5 // pred_region
        %s2278 = ssub.s32 %s21, 2
        // Predicated region
        $region69: #{tpu_custom_call.1} parent=67 // pred_check
          %p2279 = pneg %p202
        $region70: #{tpu_custom_call.1} parent=67 // pred_check_branch
          %2281 = sbr.rel (%p2279) target = $region72
        $region71: #{tpu_custom_call.1} parent=67 // pred_region
          %s2282 = sand.u32 %s187, 1
          %s2283 = scalar_lea.sflag [#allocation5], %s2282
          %s2284 = sand.u32 %s187, 1
          %s2285 = smul.addr %s2284, 16
          %s2286 = scalar_lea.vmem [#allocation9], %s2285
          %2287 = dma.done %s2283, 256
        $region72: #{tpu_custom_call.1} parent=67 // pred_fallthru
          _
      $region68: #{tpu_custom_call.1} parent=5 // pred_fallthru
        _
    $region6: #{tpu_custom_call.1} parent=1 // loop_footer
      %s25 = sadd.s32 1, %s21
    $region7: #{tpu_custom_call.1} parent=1 // loop_footer_branch
      %20 = sbr.rel target = $region3
    $region8: #{tpu_custom_call.1} parent=1 // loop_exit
      _
    %2288 = vsyncpa [#allocation4], 1
    %s2289 = scalar_lea.sflag [#allocation4], 1
    %2290 = vsyncpa %s2289, 1
    %2291 = vsyncpa [#allocation7], 1
    %2292 = vsyncpa [#allocation5], 1
    %s2293 = scalar_lea.sflag [#allocation5], 1
    %2294 = vsyncpa %s2293, 1

</llo_original>
